<compile_context>
chip_gen: v7x
topology: tpu7x:2x2x1
jax: 0.10.0
libtpu: 0.0.40
codegen_flags: <defaults>
</compile_context>

<pallas_src>
import math

import jax
import jax.numpy as jnp
import numpy as np
from jax import lax
from jax.experimental import pallas as pl
from jax.experimental.pallas import tpu as pltpu

THRESH = 0.5   # global `thresh` used by ActFun.forward
DECAY = 0.25   # LIFNode init_decay
EPS = 1e-5     # LayerNorm / BatchNorm2d default eps


# ----------------------------------------------------------------------------
# Tiled, pipelined kernel (lamda == 1.0: LayerNorm branch only, rows independent)
# ----------------------------------------------------------------------------
def _make_tiled_kernel(T, tile_bl, Din, H, Dout):
    def layernorm(h, w, b):
        mu = jnp.mean(h, axis=-1, keepdims=True)
        var = jnp.mean(jnp.square(h - mu), axis=-1, keepdims=True)
        return (h - mu) * lax.rsqrt(var + EPS) * w + b

    def kernel(x_ref, w1_ref, b1_ref, ln1w_ref, ln1b_ref,
               w2_ref, b2_ref, ln2w_ref, ln2b_ref,
               out_ref, s1_ref, s2_ref):
        # ---- LIF1: spikes for every time step into flat (T*tile, Din) scratch.
        #      Static Python unroll over T (compile-time), static sublane-aligned
        #      stores (tile_bl % 8 == 0).
        mem = x_ref[0]                                       # (tile_bl, Din)
        spk = (mem > THRESH).astype(jnp.float32)
        s1_ref[0:tile_bl, :] = spk
        for t in range(1, T):
            mem = mem * DECAY * (1.0 - spk) + x_ref[t]
            spk = (mem > THRESH).astype(jnp.float32)
            s1_ref[t * tile_bl:(t + 1) * tile_bl, :] = spk

        # ---- fc1 + LayerNorm: one MXU pass over all T*tile rows --------------
        h = jnp.dot(s1_ref[...], w1_ref[...],
                    preferred_element_type=jnp.float32) + b1_ref[...]
        h = layernorm(h, ln1w_ref[...], ln1b_ref[...])       # (T*tile, H)

        # ---- LIF2 (sequential over t; static sublane-aligned slices of h) ----
        mem = h[0:tile_bl, :]
        spk = (mem > THRESH).astype(jnp.float32)
        s2_ref[0:tile_bl, :] = spk
        for t in range(1, T):
            mem = mem * DECAY * (1.0 - spk) + h[t * tile_bl:(t + 1) * tile_bl, :]
            spk = (mem > THRESH).astype(jnp.float32)
            s2_ref[t * tile_bl:(t + 1) * tile_bl, :] = spk

        # ---- fc2 + LayerNorm: one MXU pass ------------------------------------
        y = jnp.dot(s2_ref[...], w2_ref[...],
                    preferred_element_type=jnp.float32) + b2_ref[...]
        y = layernorm(y, ln2w_ref[...], ln2b_ref[...])        # (T*tile, Dout)
        for t in range(T):
            out_ref[t] = y[t * tile_bl:(t + 1) * tile_bl, :]

    return kernel


# ----------------------------------------------------------------------------
# Monolithic fallback (general lamda; BatchNorm stats span all T*B*L rows)
# ----------------------------------------------------------------------------
def _make_monolithic_kernel(T, BL, Din, H, Dout, lamda):
    def ptnorm(h, lnw, lnb, bnw, bnb):
        ln = bn = None
        if lamda != 0.0:
            mu = jnp.mean(h, axis=-1, keepdims=True)
            var = jnp.mean(jnp.square(h - mu), axis=-1, keepdims=True)
            ln = (h - mu) * lax.rsqrt(var + EPS) * lnw + lnb
            if lamda == 1.0:
                return ln
        if lamda != 1.0:
            bmu = jnp.mean(h, axis=0, keepdims=True)
            bvar = jnp.mean(jnp.square(h - bmu), axis=0, keepdims=True)
            bn = (h - bmu) * lax.rsqrt(bvar + EPS) * bnw + bnb
            if lamda == 0.0:
                return bn
        return lamda * ln + (1.0 - lamda) * bn

    def kernel(x_ref, w1_ref, b1_ref, ln1w_ref, ln1b_ref, bn1w_ref, bn1b_ref,
               w2_ref, b2_ref, ln2w_ref, ln2b_ref, bn2w_ref, bn2b_ref,
               out_ref, s1_ref, s2_ref):
        # ---------------- LIF1 (static unroll, flat (T*BL, Din) scratch) -----
        mem = x_ref[0]
        spk = (mem > THRESH).astype(jnp.float32)
        s1_ref[0:BL, :] = spk
        for t in range(1, T):
            mem = mem * DECAY * (1.0 - spk) + x_ref[t]
            spk = (mem > THRESH).astype(jnp.float32)
            s1_ref[t * BL:(t + 1) * BL, :] = spk

        # ---------------- fc1 + PTNorm1 --------------------------------------
        h = jnp.dot(s1_ref[...], w1_ref[...],
                    preferred_element_type=jnp.float32) + b1_ref[...]
        h = ptnorm(h, ln1w_ref[...], ln1b_ref[...], bn1w_ref[...], bn1b_ref[...])

        # ---------------- LIF2 ------------------------------------------------
        mem = h[0:BL, :]
        spk = (mem > THRESH).astype(jnp.float32)
        s2_ref[0:BL, :] = spk
        for t in range(1, T):
            mem = mem * DECAY * (1.0 - spk) + h[t * BL:(t + 1) * BL, :]
            spk = (mem > THRESH).astype(jnp.float32)
            s2_ref[t * BL:(t + 1) * BL, :] = spk

        # ---------------- fc2 + PTNorm2 ---------------------------------------
        y = jnp.dot(s2_ref[...], w2_ref[...],
                    preferred_element_type=jnp.float32) + b2_ref[...]
        y = ptnorm(y, ln2w_ref[...], ln2b_ref[...], bn2w_ref[...], bn2b_ref[...])
        for t in range(T):
            out_ref[t] = y[t * BL:(t + 1) * BL, :]

    return kernel


# ----------------------------------------------------------------------------
# Wrapper
# ----------------------------------------------------------------------------
def _tile_footprint_bytes(tbl, T, Din, H, Dout):
    io = 2 * 4 * T * tbl * (Din + Dout)          # x/out blocks, double-buffered
    scratch = 4 * T * tbl * (Din + H)            # spike scratch (flat)
    work = 4 * T * tbl * (2 * H + 2 * Dout)      # h / y working values
    return io + scratch + work


def _pick_tile_bl(BL, T, Din, H, Dout, budget_bytes=12 * 1024 * 1024):
    """Largest multiple-of-8 divisor of BL whose full per-tile footprint fits
    the budget (falls back to the full BL extent if no aligned divisor)."""
    cands = [d for d in range(8, BL + 1, 8) if BL % d == 0]
    if not cands:
        return BL
    best = cands[0]
    for c in cands:
        if _tile_footprint_bytes(c, T, Din, H, Dout) <= budget_bytes:
            best = max(best, c)
    return best


def mlp_forward(x, params, lamda, tile_bl=None):
    """x: [T, B, L, Din] float32 -> [T, B, L, Dout] float32."""
    T, B, L, Din = x.shape
    H = params["w1"].shape[0]
    Dout = params["w2"].shape[0]
    BL = B * L
    lamda = float(lamda)

    x3 = x.reshape(T, BL, Din).astype(jnp.float32)

    def row(v):  # 1-D params as (1, C) for clean lane broadcasting
        return v.reshape(1, -1).astype(jnp.float32)

    w1 = params["w1"].T.astype(jnp.float32)   # (Din, H)
    w2 = params["w2"].T.astype(jnp.float32)   # (H, Dout)

    if lamda == 1.0:
        # --------- tiled, pipelined path (LN only; rows independent) ---------
        if tile_bl is None:
            tile_bl = _pick_tile_bl(BL, T, Din, H, Dout)
        if BL % tile_bl != 0 or (tile_bl % 8 != 0 and tile_bl != BL):
            raise ValueError(f"invalid tile_bl={tile_bl} for BL={BL}")
        grid = (BL // tile_bl,)

        kernel = _make_tiled_kernel(T, tile_bl, Din, H, Dout)

        def resident(shape):  # full-array block, constant index_map => stays in VMEM
            return pl.BlockSpec(shape, lambda i, _s=shape: (0,) * len(_s))

        in_specs = [
            pl.BlockSpec((T, tile_bl, Din), lambda i: (0, i, 0)),   # x tile
            resident((Din, H)), resident((1, H)),
            resident((1, H)), resident((1, H)),
            resident((H, Dout)), resident((1, Dout)),
            resident((1, Dout)), resident((1, Dout)),
        ]
        out_specs = pl.BlockSpec((T, tile_bl, Dout), lambda i: (0, i, 0))

        # VMEM budget: per-tile footprint (+ resident params), 2x headroom.
        resident_bytes = 4 * (Din * H + H * Dout + 3 * H + 3 * Dout)
        footprint = _tile_footprint_bytes(tile_bl, T, Din, H, Dout)
        vmem_limit = int(max(16 * 1024 * 1024,
                             min(48 * 1024 * 1024,
                                 2 * (footprint + resident_bytes))))

        flops = 2 * T * BL * (Din * H + H * Dout)
        bytes_accessed = 4 * (T * BL * (Din + Dout) + Din * H + H * Dout
                              + 3 * H + 3 * Dout)

        out3 = pl.pallas_call(
            kernel,
            out_shape=jax.ShapeDtypeStruct((T, BL, Dout), jnp.float32),
            grid=grid,
            in_specs=in_specs,
            out_specs=out_specs,
            scratch_shapes=[
                pltpu.VMEM((T * tile_bl, Din), jnp.float32),  # LIF1 spikes (flat)
                pltpu.VMEM((T * tile_bl, H), jnp.float32),    # LIF2 spikes (flat)
            ],
            compiler_params=pltpu.CompilerParams(
                dimension_semantics=("parallel",),
                vmem_limit_bytes=vmem_limit),
            cost_estimate=pl.CostEstimate(
                flops=flops,
                transcendentals=2 * T * BL,
                bytes_accessed=bytes_accessed),
        )(x3, w1, row(params["b1"]), row(params["ln1_w"]), row(params["ln1_b"]),
          w2, row(params["b2"]), row(params["ln2_w"]), row(params["ln2_b"]))
    else:
        # --------- monolithic path (BN stats need every T*B*L row) -----------
        kernel = _make_monolithic_kernel(T, BL, Din, H, Dout, lamda)
        vmem_spec = pl.BlockSpec(memory_space=pltpu.MemorySpace.VMEM)
        args = (
            x3,
            w1, row(params["b1"]),
            row(params["ln1_w"]), row(params["ln1_b"]),
            row(params["bn1_w"]), row(params["bn1_b"]),
            w2, row(params["b2"]),
            row(params["ln2_w"]), row(params["ln2_b"]),
            row(params["bn2_w"]), row(params["bn2_b"]),
        )
        out3 = pl.pallas_call(
            kernel,
            out_shape=jax.ShapeDtypeStruct((T, BL, Dout), jnp.float32),
            in_specs=[vmem_spec] * len(args),
            out_specs=vmem_spec,
            scratch_shapes=[
                pltpu.VMEM((T * BL, Din), jnp.float32),  # LIF1 spikes (flat)
                pltpu.VMEM((T * BL, H), jnp.float32),    # LIF2 spikes (flat)
            ],
            compiler_params=pltpu.CompilerParams(
                vmem_limit_bytes=48 * 1024 * 1024),
        )(*args)

    return out3.reshape(T, B, L, Dout)


# ----------------------------------------------------------------------------
# Parameter init / pure-JAX reference
# ----------------------------------------------------------------------------
def init_params(key, Din, H, Dout):
    """Deterministic init matching nn.Linear / LayerNorm / BatchNorm2d shapes."""
    ks = jax.random.split(key, 4)
    bnd1 = 1.0 / math.sqrt(Din)
    bnd2 = 1.0 / math.sqrt(H)
    return dict(
        # nn.Linear: weight [out, in], bias [out]
        w1=jax.random.uniform(ks[0], (H, Din), jnp.float32, -bnd1, bnd1),
        b1=jax.random.uniform(ks[1], (H,), jnp.float32, -bnd1, bnd1),
        w2=jax.random.uniform(ks[2], (Dout, H), jnp.float32, -bnd2, bnd2),
        b2=jax.random.uniform(ks[3], (Dout,), jnp.float32, -bnd2, bnd2),
        # LayerNorm / BatchNorm2d affine params (PyTorch defaults: gamma=1, beta=0)
        ln1_w=jnp.ones((H,), jnp.float32), ln1_b=jnp.zeros((H,), jnp.float32),
        bn1_w=jnp.ones((H,), jnp.float32), bn1_b=jnp.zeros((H,), jnp.float32),
        ln2_w=jnp.ones((Dout,), jnp.float32), ln2_b=jnp.zeros((Dout,), jnp.float32),
        bn2_w=jnp.ones((Dout,), jnp.float32), bn2_b=jnp.zeros((Dout,), jnp.float32),
    )


def ref_forward(x, p, lamda):
    """Pure-JAX reference replicating the PyTorch forward (training mode)."""

    def lif(xi):
        mem = xi[0]
        spk = (mem > THRESH).astype(jnp.float32)
        outs = [spk]
        for t in range(1, xi.shape[0]):
            mem = mem * DECAY * (1.0 - spk) + xi[t]
            spk = (mem > THRESH).astype(jnp.float32)
            outs.append(spk)
        return jnp.stack(outs, axis=0)

    def ptnorm(h, lw, lb, bw, bb):
        mu = h.mean(-1, keepdims=True)
        var = ((h - mu) ** 2).mean(-1, keepdims=True)
        ln = (h - mu) / jnp.sqrt(var + EPS) * lw + lb
        bmu = h.mean(axis=(0, 1, 2), keepdims=True)
        bvar = ((h - bmu) ** 2).mean(axis=(0, 1, 2), keepdims=True)
        bn = (h - bmu) / jnp.sqrt(bvar + EPS) * bw + bb
        return lamda * ln + (1 - lamda) * bn

    h = lif(x)
    h = h @ p["w1"].T + p["b1"]
    h = ptnorm(h, p["ln1_w"], p["ln1_b"], p["bn1_w"], p["bn1_b"])
    h = lif(h)
    h = h @ p["w2"].T + p["b2"]
    h = ptnorm(h, p["ln2_w"], p["ln2_b"], p["bn2_w"], p["bn2_b"])
    return h


if __name__ == "__main__":
    # Small shapes consistent with mlp's [T, B, L, D] input convention.
    T, B, L, Din, H, Dout = 8, 2, 8, 32, 64, 32
    num_training_steps = 100

    # PTNorm state at the first training forward: warm=0, iter==total_step
    #   => lamda = r0 * iter / total_step = 1.0   (or 0 if total_step == 0).
    step = int(num_training_steps * 0.1)
    lamda = 0.0 if step == 0 else 1.0
    # TODO(synk): PTNorm's warm/iter buffer decrement and LIFNode fire-rate
    # bookkeeping are stateful host-side logic and are not part of the kernel.

    key = jax.random.PRNGKey(0)
    kx, kp = jax.random.split(key)
    x = jax.random.normal(kx, (T, B, L, Din), dtype=jnp.float32)
    params = init_params(kp, Din, H, Dout)

    # Main path (model's actual lamda=1.0): tiled over BL with grid=(2,).
    out = mlp_forward(x, params, lamda, tile_bl=8)
    out = jax.block_until_ready(out)
    ref = ref_forward(x, params, lamda)
    np.testing.assert_allclose(np.asarray(out), np.asarray(ref),
                               rtol=1e-4, atol=1e-4)

    # Also exercise the auto tile picker (single-tile grid here).
    out_auto = jax.block_until_ready(mlp_forward(x, params, lamda))
    np.testing.assert_allclose(np.asarray(out_auto), np.asarray(ref),
                               rtol=1e-4, atol=1e-4)

    # Fallback path (mixed LN/BN): monolithic kernel, correct batch statistics.
    out_mix = mlp_forward(x, params, 0.5)
    out_mix = jax.block_until_ready(out_mix)
    ref_mix = ref_forward(x, params, 0.5)
    np.testing.assert_allclose(np.asarray(out_mix), np.asarray(ref_mix),
                               rtol=1e-4, atol=1e-4)

    print("KERNEL_OK")
</pallas_src>

<mosaic_0001>
module attributes {stable_mosaic.version = 11 : i64} {
  func.func @kernel(%arg0: i32, %arg1: memref<8x8x32xf32, #tpu.memory_space<vmem>>, %arg2: memref<32x64xf32, #tpu.memory_space<vmem>>, %arg3: memref<1x64xf32, #tpu.memory_space<vmem>>, %arg4: memref<1x64xf32, #tpu.memory_space<vmem>>, %arg5: memref<1x64xf32, #tpu.memory_space<vmem>>, %arg6: memref<64x32xf32, #tpu.memory_space<vmem>>, %arg7: memref<1x32xf32, #tpu.memory_space<vmem>>, %arg8: memref<1x32xf32, #tpu.memory_space<vmem>>, %arg9: memref<1x32xf32, #tpu.memory_space<vmem>>, %arg10: memref<8x8x32xf32, #tpu.memory_space<vmem>>, %arg11: memref<64x32xf32, #tpu.memory_space<vmem>>, %arg12: memref<64x64xf32, #tpu.memory_space<vmem>>) attributes {dimension_semantics = [#tpu.dimension_semantics<parallel>], iteration_bounds = array<i64: 2>, scalar_prefetch = 0 : i64, scratch_operands = 2 : i64, tpu.core_type = #tpu.core_type<tc>, window_params = [{transform_indices = @transform_0, window_bounds = array<i64: 8, 8, 32>}, {pipeline_mode = #tpu.pipeline_mode<synchronous>, transform_indices = @transform_1, window_bounds = array<i64: 32, 64>}, {pipeline_mode = #tpu.pipeline_mode<synchronous>, transform_indices = @transform_2, window_bounds = array<i64: 1, 64>}, {pipeline_mode = #tpu.pipeline_mode<synchronous>, transform_indices = @transform_3, window_bounds = array<i64: 1, 64>}, {pipeline_mode = #tpu.pipeline_mode<synchronous>, transform_indices = @transform_4, window_bounds = array<i64: 1, 64>}, {pipeline_mode = #tpu.pipeline_mode<synchronous>, transform_indices = @transform_5, window_bounds = array<i64: 64, 32>}, {pipeline_mode = #tpu.pipeline_mode<synchronous>, transform_indices = @transform_6, window_bounds = array<i64: 1, 32>}, {pipeline_mode = #tpu.pipeline_mode<synchronous>, transform_indices = @transform_7, window_bounds = array<i64: 1, 32>}, {pipeline_mode = #tpu.pipeline_mode<synchronous>, transform_indices = @transform_8, window_bounds = array<i64: 1, 32>}, {transform_indices = @transform_9, window_bounds = array<i64: 8, 8, 32>}]} {
    %c0 = arith.constant 0 : index
    %c0_0 = arith.constant 0 : index
    %c0_1 = arith.constant 0 : index
    %0 = vector.load %arg1[%c0, %c0_0, %c0_1] : memref<8x8x32xf32, #tpu.memory_space<vmem>>, vector<1x8x32xf32>
    %1 = vector.shape_cast %0 : vector<1x8x32xf32> to vector<8x32xf32>
    %cst = arith.constant 5.000000e-01 : f32
    %2 = vector.broadcast %cst : f32 to vector<8x32xf32>
    %3 = arith.cmpf ogt, %1, %2 : vector<8x32xf32>
    %4 = arith.extui %3 : vector<8x32xi1> to vector<8x32xi32>
    %5 = arith.sitofp %4 : vector<8x32xi32> to vector<8x32xf32>
    %c0_2 = arith.constant 0 : index
    %c0_3 = arith.constant 0 : index
    %6 = vector.load %arg11[%c0_2, %c0_3] : memref<64x32xf32, #tpu.memory_space<vmem>>, vector<8x32xf32>
    tpu.vector_store %arg11[%c0_2, %c0_3], %5 {strides = array<i32>} : memref<64x32xf32, #tpu.memory_space<vmem>>, vector<8x32xf32>,
    %cst_4 = arith.constant 2.500000e-01 : f32
    %7 = vector.broadcast %cst_4 : f32 to vector<8x32xf32>
    %8 = arith.mulf %1, %7 : vector<8x32xf32>
    %cst_5 = arith.constant 1.000000e+00 : f32
    %9 = vector.broadcast %cst_5 : f32 to vector<8x32xf32>
    %10 = arith.subf %9, %5 : vector<8x32xf32>
    %11 = arith.mulf %8, %10 : vector<8x32xf32>
    %c1 = arith.constant 1 : index
    %c0_6 = arith.constant 0 : index
    %c0_7 = arith.constant 0 : index
    %12 = vector.load %arg1[%c1, %c0_6, %c0_7] : memref<8x8x32xf32, #tpu.memory_space<vmem>>, vector<1x8x32xf32>
    %13 = vector.shape_cast %12 : vector<1x8x32xf32> to vector<8x32xf32>
    %14 = arith.addf %11, %13 : vector<8x32xf32>
    %cst_8 = arith.constant 5.000000e-01 : f32
    %15 = vector.broadcast %cst_8 : f32 to vector<8x32xf32>
    %16 = arith.cmpf ogt, %14, %15 : vector<8x32xf32>
    %17 = arith.extui %16 : vector<8x32xi1> to vector<8x32xi32>
    %18 = arith.sitofp %17 : vector<8x32xi32> to vector<8x32xf32>
    %c8 = arith.constant 8 : index
    %c0_9 = arith.constant 0 : index
    %19 = vector.load %arg11[%c8, %c0_9] : memref<64x32xf32, #tpu.memory_space<vmem>>, vector<8x32xf32>
    tpu.vector_store %arg11[%c8, %c0_9], %18 {strides = array<i32>} : memref<64x32xf32, #tpu.memory_space<vmem>>, vector<8x32xf32>,
    %cst_10 = arith.constant 2.500000e-01 : f32
    %20 = vector.broadcast %cst_10 : f32 to vector<8x32xf32>
    %21 = arith.mulf %14, %20 : vector<8x32xf32>
    %cst_11 = arith.constant 1.000000e+00 : f32
    %22 = vector.broadcast %cst_11 : f32 to vector<8x32xf32>
    %23 = arith.subf %22, %18 : vector<8x32xf32>
    %24 = arith.mulf %21, %23 : vector<8x32xf32>
    %c2 = arith.constant 2 : index
    %c0_12 = arith.constant 0 : index
    %c0_13 = arith.constant 0 : index
    %25 = vector.load %arg1[%c2, %c0_12, %c0_13] : memref<8x8x32xf32, #tpu.memory_space<vmem>>, vector<1x8x32xf32>
    %26 = vector.shape_cast %25 : vector<1x8x32xf32> to vector<8x32xf32>
    %27 = arith.addf %24, %26 : vector<8x32xf32>
    %cst_14 = arith.constant 5.000000e-01 : f32
    %28 = vector.broadcast %cst_14 : f32 to vector<8x32xf32>
    %29 = arith.cmpf ogt, %27, %28 : vector<8x32xf32>
    %30 = arith.extui %29 : vector<8x32xi1> to vector<8x32xi32>
    %31 = arith.sitofp %30 : vector<8x32xi32> to vector<8x32xf32>
    %c16 = arith.constant 16 : index
    %c0_15 = arith.constant 0 : index
    %32 = vector.load %arg11[%c16, %c0_15] : memref<64x32xf32, #tpu.memory_space<vmem>>, vector<8x32xf32>
    tpu.vector_store %arg11[%c16, %c0_15], %31 {strides = array<i32>} : memref<64x32xf32, #tpu.memory_space<vmem>>, vector<8x32xf32>,
    %cst_16 = arith.constant 2.500000e-01 : f32
    %33 = vector.broadcast %cst_16 : f32 to vector<8x32xf32>
    %34 = arith.mulf %27, %33 : vector<8x32xf32>
    %cst_17 = arith.constant 1.000000e+00 : f32
    %35 = vector.broadcast %cst_17 : f32 to vector<8x32xf32>
    %36 = arith.subf %35, %31 : vector<8x32xf32>
    %37 = arith.mulf %34, %36 : vector<8x32xf32>
    %c3 = arith.constant 3 : index
    %c0_18 = arith.constant 0 : index
    %c0_19 = arith.constant 0 : index
    %38 = vector.load %arg1[%c3, %c0_18, %c0_19] : memref<8x8x32xf32, #tpu.memory_space<vmem>>, vector<1x8x32xf32>
    %39 = vector.shape_cast %38 : vector<1x8x32xf32> to vector<8x32xf32>
    %40 = arith.addf %37, %39 : vector<8x32xf32>
    %cst_20 = arith.constant 5.000000e-01 : f32
    %41 = vector.broadcast %cst_20 : f32 to vector<8x32xf32>
    %42 = arith.cmpf ogt, %40, %41 : vector<8x32xf32>
    %43 = arith.extui %42 : vector<8x32xi1> to vector<8x32xi32>
    %44 = arith.sitofp %43 : vector<8x32xi32> to vector<8x32xf32>
    %c24 = arith.constant 24 : index
    %c0_21 = arith.constant 0 : index
    %45 = vector.load %arg11[%c24, %c0_21] : memref<64x32xf32, #tpu.memory_space<vmem>>, vector<8x32xf32>
    tpu.vector_store %arg11[%c24, %c0_21], %44 {strides = array<i32>} : memref<64x32xf32, #tpu.memory_space<vmem>>, vector<8x32xf32>,
    %cst_22 = arith.constant 2.500000e-01 : f32
    %46 = vector.broadcast %cst_22 : f32 to vector<8x32xf32>
    %47 = arith.mulf %40, %46 : vector<8x32xf32>
    %cst_23 = arith.constant 1.000000e+00 : f32
    %48 = vector.broadcast %cst_23 : f32 to vector<8x32xf32>
    %49 = arith.subf %48, %44 : vector<8x32xf32>
    %50 = arith.mulf %47, %49 : vector<8x32xf32>
    %c4 = arith.constant 4 : index
    %c0_24 = arith.constant 0 : index
    %c0_25 = arith.constant 0 : index
    %51 = vector.load %arg1[%c4, %c0_24, %c0_25] : memref<8x8x32xf32, #tpu.memory_space<vmem>>, vector<1x8x32xf32>
    %52 = vector.shape_cast %51 : vector<1x8x32xf32> to vector<8x32xf32>
    %53 = arith.addf %50, %52 : vector<8x32xf32>
    %cst_26 = arith.constant 5.000000e-01 : f32
    %54 = vector.broadcast %cst_26 : f32 to vector<8x32xf32>
    %55 = arith.cmpf ogt, %53, %54 : vector<8x32xf32>
    %56 = arith.extui %55 : vector<8x32xi1> to vector<8x32xi32>
    %57 = arith.sitofp %56 : vector<8x32xi32> to vector<8x32xf32>
    %c32 = arith.constant 32 : index
    %c0_27 = arith.constant 0 : index
    %58 = vector.load %arg11[%c32, %c0_27] : memref<64x32xf32, #tpu.memory_space<vmem>>, vector<8x32xf32>
    tpu.vector_store %arg11[%c32, %c0_27], %57 {strides = array<i32>} : memref<64x32xf32, #tpu.memory_space<vmem>>, vector<8x32xf32>,
    %cst_28 = arith.constant 2.500000e-01 : f32
    %59 = vector.broadcast %cst_28 : f32 to vector<8x32xf32>
    %60 = arith.mulf %53, %59 : vector<8x32xf32>
    %cst_29 = arith.constant 1.000000e+00 : f32
    %61 = vector.broadcast %cst_29 : f32 to vector<8x32xf32>
    %62 = arith.subf %61, %57 : vector<8x32xf32>
    %63 = arith.mulf %60, %62 : vector<8x32xf32>
    %c5 = arith.constant 5 : index
    %c0_30 = arith.constant 0 : index
    %c0_31 = arith.constant 0 : index
    %64 = vector.load %arg1[%c5, %c0_30, %c0_31] : memref<8x8x32xf32, #tpu.memory_space<vmem>>, vector<1x8x32xf32>
    %65 = vector.shape_cast %64 : vector<1x8x32xf32> to vector<8x32xf32>
    %66 = arith.addf %63, %65 : vector<8x32xf32>
    %cst_32 = arith.constant 5.000000e-01 : f32
    %67 = vector.broadcast %cst_32 : f32 to vector<8x32xf32>
    %68 = arith.cmpf ogt, %66, %67 : vector<8x32xf32>
    %69 = arith.extui %68 : vector<8x32xi1> to vector<8x32xi32>
    %70 = arith.sitofp %69 : vector<8x32xi32> to vector<8x32xf32>
    %c40 = arith.constant 40 : index
    %c0_33 = arith.constant 0 : index
    %71 = vector.load %arg11[%c40, %c0_33] : memref<64x32xf32, #tpu.memory_space<vmem>>, vector<8x32xf32>
    tpu.vector_store %arg11[%c40, %c0_33], %70 {strides = array<i32>} : memref<64x32xf32, #tpu.memory_space<vmem>>, vector<8x32xf32>,
    %cst_34 = arith.constant 2.500000e-01 : f32
    %72 = vector.broadcast %cst_34 : f32 to vector<8x32xf32>
    %73 = arith.mulf %66, %72 : vector<8x32xf32>
    %cst_35 = arith.constant 1.000000e+00 : f32
    %74 = vector.broadcast %cst_35 : f32 to vector<8x32xf32>
    %75 = arith.subf %74, %70 : vector<8x32xf32>
    %76 = arith.mulf %73, %75 : vector<8x32xf32>
    %c6 = arith.constant 6 : index
    %c0_36 = arith.constant 0 : index
    %c0_37 = arith.constant 0 : index
    %77 = vector.load %arg1[%c6, %c0_36, %c0_37] : memref<8x8x32xf32, #tpu.memory_space<vmem>>, vector<1x8x32xf32>
    %78 = vector.shape_cast %77 : vector<1x8x32xf32> to vector<8x32xf32>
    %79 = arith.addf %76, %78 : vector<8x32xf32>
    %cst_38 = arith.constant 5.000000e-01 : f32
    %80 = vector.broadcast %cst_38 : f32 to vector<8x32xf32>
    %81 = arith.cmpf ogt, %79, %80 : vector<8x32xf32>
    %82 = arith.extui %81 : vector<8x32xi1> to vector<8x32xi32>
    %83 = arith.sitofp %82 : vector<8x32xi32> to vector<8x32xf32>
    %c48 = arith.constant 48 : index
    %c0_39 = arith.constant 0 : index
    %84 = vector.load %arg11[%c48, %c0_39] : memref<64x32xf32, #tpu.memory_space<vmem>>, vector<8x32xf32>
    tpu.vector_store %arg11[%c48, %c0_39], %83 {strides = array<i32>} : memref<64x32xf32, #tpu.memory_space<vmem>>, vector<8x32xf32>,
    %cst_40 = arith.constant 2.500000e-01 : f32
    %85 = vector.broadcast %cst_40 : f32 to vector<8x32xf32>
    %86 = arith.mulf %79, %85 : vector<8x32xf32>
    %cst_41 = arith.constant 1.000000e+00 : f32
    %87 = vector.broadcast %cst_41 : f32 to vector<8x32xf32>
    %88 = arith.subf %87, %83 : vector<8x32xf32>
    %89 = arith.mulf %86, %88 : vector<8x32xf32>
    %c7 = arith.constant 7 : index
    %c0_42 = arith.constant 0 : index
    %c0_43 = arith.constant 0 : index
    %90 = vector.load %arg1[%c7, %c0_42, %c0_43] : memref<8x8x32xf32, #tpu.memory_space<vmem>>, vector<1x8x32xf32>
    %91 = vector.shape_cast %90 : vector<1x8x32xf32> to vector<8x32xf32>
    %92 = arith.addf %89, %91 : vector<8x32xf32>
    %cst_44 = arith.constant 5.000000e-01 : f32
    %93 = vector.broadcast %cst_44 : f32 to vector<8x32xf32>
    %94 = arith.cmpf ogt, %92, %93 : vector<8x32xf32>
    %95 = arith.extui %94 : vector<8x32xi1> to vector<8x32xi32>
    %96 = arith.sitofp %95 : vector<8x32xi32> to vector<8x32xf32>
    %c56 = arith.constant 56 : index
    %c0_45 = arith.constant 0 : index
    %97 = vector.load %arg11[%c56, %c0_45] : memref<64x32xf32, #tpu.memory_space<vmem>>, vector<8x32xf32>
    tpu.vector_store %arg11[%c56, %c0_45], %96 {strides = array<i32>} : memref<64x32xf32, #tpu.memory_space<vmem>>, vector<8x32xf32>,
    %c0_46 = arith.constant 0 : index
    %c0_47 = arith.constant 0 : index
    %98 = vector.load %arg11[%c0_46, %c0_47] : memref<64x32xf32, #tpu.memory_space<vmem>>, vector<64x32xf32>
    %c0_48 = arith.constant 0 : index
    %c0_49 = arith.constant 0 : index
    %99 = vector.load %arg2[%c0_48, %c0_49] : memref<32x64xf32, #tpu.memory_space<vmem>>, vector<32x64xf32>
    %cst_50 = arith.constant dense<0.000000e+00> : vector<64x64xf32>
    %100 = tpu.matmul %98, %99, %cst_50 {dimension_numbers = #tpu.dot_dimension_numbers<[1], [0], [0], [1], [0, 0, 1, 1], [], []>} : vector<64x32xf32>, vector<32x64xf32>, vector<64x64xf32> -> vector<64x64xf32>
    %c0_51 = arith.constant 0 : index
    %c0_52 = arith.constant 0 : index
    %101 = vector.load %arg3[%c0_51, %c0_52] : memref<1x64xf32, #tpu.memory_space<vmem>>, vector<1x64xf32>
    %102 = vector.broadcast %101 : vector<1x64xf32> to vector<64x64xf32>
    %103 = arith.addf %100, %102 : vector<64x64xf32>
    %c0_53 = arith.constant 0 : index
    %c0_54 = arith.constant 0 : index
    %104 = vector.load %arg4[%c0_53, %c0_54] : memref<1x64xf32, #tpu.memory_space<vmem>>, vector<1x64xf32>
    %c0_55 = arith.constant 0 : index
    %c0_56 = arith.constant 0 : index
    %105 = vector.load %arg5[%c0_55, %c0_56] : memref<1x64xf32, #tpu.memory_space<vmem>>, vector<1x64xf32>
    %cst_57 = arith.constant dense<0.000000e+00> : vector<64xf32>
    %106 = vector.multi_reduction <add>, %103, %cst_57 [1] : vector<64x64xf32> to vector<64xf32>
    %107 = vector.shape_cast %106 : vector<64xf32> to vector<64x1xf32>
    %cst_58 = arith.constant 6.400000e+01 : f32
    %108 = vector.broadcast %cst_58 : f32 to vector<64x1xf32>
    %109 = arith.divf %107, %108 : vector<64x1xf32>
    %110 = vector.broadcast %109 : vector<64x1xf32> to vector<64x64xf32>
    %111 = arith.subf %103, %110 : vector<64x64xf32>
    %112 = arith.mulf %111, %111 : vector<64x64xf32>
    %cst_59 = arith.constant dense<0.000000e+00> : vector<64xf32>
    %113 = vector.multi_reduction <add>, %112, %cst_59 [1] : vector<64x64xf32> to vector<64xf32>
    %114 = vector.shape_cast %113 : vector<64xf32> to vector<64x1xf32>
    %cst_60 = arith.constant 6.400000e+01 : f32
    %115 = vector.broadcast %cst_60 : f32 to vector<64x1xf32>
    %116 = arith.divf %114, %115 : vector<64x1xf32>
    %117 = vector.broadcast %109 : vector<64x1xf32> to vector<64x64xf32>
    %118 = arith.subf %103, %117 : vector<64x64xf32>
    %cst_61 = arith.constant 9.99999974E-6 : f32
    %119 = vector.broadcast %cst_61 : f32 to vector<64x1xf32>
    %120 = arith.addf %116, %119 : vector<64x1xf32>
    %121 = math.rsqrt %120 : vector<64x1xf32>
    %122 = vector.broadcast %121 : vector<64x1xf32> to vector<64x64xf32>
    %123 = arith.mulf %118, %122 : vector<64x64xf32>
    %124 = vector.broadcast %104 : vector<1x64xf32> to vector<64x64xf32>
    %125 = arith.mulf %123, %124 : vector<64x64xf32>
    %126 = vector.broadcast %105 : vector<1x64xf32> to vector<64x64xf32>
    %127 = arith.addf %125, %126 : vector<64x64xf32>
    %128 = vector.extract_strided_slice %127 {offsets = [0, 0], sizes = [8, 64], strides = [1, 1]} : vector<64x64xf32> to vector<8x64xf32>
    %cst_62 = arith.constant 5.000000e-01 : f32
    %129 = vector.broadcast %cst_62 : f32 to vector<8x64xf32>
    %130 = arith.cmpf ogt, %128, %129 : vector<8x64xf32>
    %131 = arith.extui %130 : vector<8x64xi1> to vector<8x64xi32>
    %132 = arith.sitofp %131 : vector<8x64xi32> to vector<8x64xf32>
    %c0_63 = arith.constant 0 : index
    %c0_64 = arith.constant 0 : index
    %133 = vector.load %arg12[%c0_63, %c0_64] : memref<64x64xf32, #tpu.memory_space<vmem>>, vector<8x64xf32>
    tpu.vector_store %arg12[%c0_63, %c0_64], %132 {strides = array<i32>} : memref<64x64xf32, #tpu.memory_space<vmem>>, vector<8x64xf32>,
    %cst_65 = arith.constant 2.500000e-01 : f32
    %134 = vector.broadcast %cst_65 : f32 to vector<8x64xf32>
    %135 = arith.mulf %128, %134 : vector<8x64xf32>
    %cst_66 = arith.constant 1.000000e+00 : f32
    %136 = vector.broadcast %cst_66 : f32 to vector<8x64xf32>
    %137 = arith.subf %136, %132 : vector<8x64xf32>
    %138 = arith.mulf %135, %137 : vector<8x64xf32>
    %139 = vector.extract_strided_slice %127 {offsets = [8, 0], sizes = [8, 64], strides = [1, 1]} : vector<64x64xf32> to vector<8x64xf32>
    %140 = arith.addf %138, %139 : vector<8x64xf32>
    %cst_67 = arith.constant 5.000000e-01 : f32
    %141 = vector.broadcast %cst_67 : f32 to vector<8x64xf32>
    %142 = arith.cmpf ogt, %140, %141 : vector<8x64xf32>
    %143 = arith.extui %142 : vector<8x64xi1> to vector<8x64xi32>
    %144 = arith.sitofp %143 : vector<8x64xi32> to vector<8x64xf32>
    %c8_68 = arith.constant 8 : index
    %c0_69 = arith.constant 0 : index
    %145 = vector.load %arg12[%c8_68, %c0_69] : memref<64x64xf32, #tpu.memory_space<vmem>>, vector<8x64xf32>
    tpu.vector_store %arg12[%c8_68, %c0_69], %144 {strides = array<i32>} : memref<64x64xf32, #tpu.memory_space<vmem>>, vector<8x64xf32>,
    %cst_70 = arith.constant 2.500000e-01 : f32
    %146 = vector.broadcast %cst_70 : f32 to vector<8x64xf32>
    %147 = arith.mulf %140, %146 : vector<8x64xf32>
    %cst_71 = arith.constant 1.000000e+00 : f32
    %148 = vector.broadcast %cst_71 : f32 to vector<8x64xf32>
    %149 = arith.subf %148, %144 : vector<8x64xf32>
    %150 = arith.mulf %147, %149 : vector<8x64xf32>
    %151 = vector.extract_strided_slice %127 {offsets = [16, 0], sizes = [8, 64], strides = [1, 1]} : vector<64x64xf32> to vector<8x64xf32>
    %152 = arith.addf %150, %151 : vector<8x64xf32>
    %cst_72 = arith.constant 5.000000e-01 : f32
    %153 = vector.broadcast %cst_72 : f32 to vector<8x64xf32>
    %154 = arith.cmpf ogt, %152, %153 : vector<8x64xf32>
    %155 = arith.extui %154 : vector<8x64xi1> to vector<8x64xi32>
    %156 = arith.sitofp %155 : vector<8x64xi32> to vector<8x64xf32>
    %c16_73 = arith.constant 16 : index
    %c0_74 = arith.constant 0 : index
    %157 = vector.load %arg12[%c16_73, %c0_74] : memref<64x64xf32, #tpu.memory_space<vmem>>, vector<8x64xf32>
    tpu.vector_store %arg12[%c16_73, %c0_74], %156 {strides = array<i32>} : memref<64x64xf32, #tpu.memory_space<vmem>>, vector<8x64xf32>,
    %cst_75 = arith.constant 2.500000e-01 : f32
    %158 = vector.broadcast %cst_75 : f32 to vector<8x64xf32>
    %159 = arith.mulf %152, %158 : vector<8x64xf32>
    %cst_76 = arith.constant 1.000000e+00 : f32
    %160 = vector.broadcast %cst_76 : f32 to vector<8x64xf32>
    %161 = arith.subf %160, %156 : vector<8x64xf32>
    %162 = arith.mulf %159, %161 : vector<8x64xf32>
    %163 = vector.extract_strided_slice %127 {offsets = [24, 0], sizes = [8, 64], strides = [1, 1]} : vector<64x64xf32> to vector<8x64xf32>
    %164 = arith.addf %162, %163 : vector<8x64xf32>
    %cst_77 = arith.constant 5.000000e-01 : f32
    %165 = vector.broadcast %cst_77 : f32 to vector<8x64xf32>
    %166 = arith.cmpf ogt, %164, %165 : vector<8x64xf32>
    %167 = arith.extui %166 : vector<8x64xi1> to vector<8x64xi32>
    %168 = arith.sitofp %167 : vector<8x64xi32> to vector<8x64xf32>
    %c24_78 = arith.constant 24 : index
    %c0_79 = arith.constant 0 : index
    %169 = vector.load %arg12[%c24_78, %c0_79] : memref<64x64xf32, #tpu.memory_space<vmem>>, vector<8x64xf32>
    tpu.vector_store %arg12[%c24_78, %c0_79], %168 {strides = array<i32>} : memref<64x64xf32, #tpu.memory_space<vmem>>, vector<8x64xf32>,
    %cst_80 = arith.constant 2.500000e-01 : f32
    %170 = vector.broadcast %cst_80 : f32 to vector<8x64xf32>
    %171 = arith.mulf %164, %170 : vector<8x64xf32>
    %cst_81 = arith.constant 1.000000e+00 : f32
    %172 = vector.broadcast %cst_81 : f32 to vector<8x64xf32>
    %173 = arith.subf %172, %168 : vector<8x64xf32>
    %174 = arith.mulf %171, %173 : vector<8x64xf32>
    %175 = vector.extract_strided_slice %127 {offsets = [32, 0], sizes = [8, 64], strides = [1, 1]} : vector<64x64xf32> to vector<8x64xf32>
    %176 = arith.addf %174, %175 : vector<8x64xf32>
    %cst_82 = arith.constant 5.000000e-01 : f32
    %177 = vector.broadcast %cst_82 : f32 to vector<8x64xf32>
    %178 = arith.cmpf ogt, %176, %177 : vector<8x64xf32>
    %179 = arith.extui %178 : vector<8x64xi1> to vector<8x64xi32>
    %180 = arith.sitofp %179 : vector<8x64xi32> to vector<8x64xf32>
    %c32_83 = arith.constant 32 : index
    %c0_84 = arith.constant 0 : index
    %181 = vector.load %arg12[%c32_83, %c0_84] : memref<64x64xf32, #tpu.memory_space<vmem>>, vector<8x64xf32>
    tpu.vector_store %arg12[%c32_83, %c0_84], %180 {strides = array<i32>} : memref<64x64xf32, #tpu.memory_space<vmem>>, vector<8x64xf32>,
    %cst_85 = arith.constant 2.500000e-01 : f32
    %182 = vector.broadcast %cst_85 : f32 to vector<8x64xf32>
    %183 = arith.mulf %176, %182 : vector<8x64xf32>
    %cst_86 = arith.constant 1.000000e+00 : f32
    %184 = vector.broadcast %cst_86 : f32 to vector<8x64xf32>
    %185 = arith.subf %184, %180 : vector<8x64xf32>
    %186 = arith.mulf %183, %185 : vector<8x64xf32>
    %187 = vector.extract_strided_slice %127 {offsets = [40, 0], sizes = [8, 64], strides = [1, 1]} : vector<64x64xf32> to vector<8x64xf32>
    %188 = arith.addf %186, %187 : vector<8x64xf32>
    %cst_87 = arith.constant 5.000000e-01 : f32
    %189 = vector.broadcast %cst_87 : f32 to vector<8x64xf32>
    %190 = arith.cmpf ogt, %188, %189 : vector<8x64xf32>
    %191 = arith.extui %190 : vector<8x64xi1> to vector<8x64xi32>
    %192 = arith.sitofp %191 : vector<8x64xi32> to vector<8x64xf32>
    %c40_88 = arith.constant 40 : index
    %c0_89 = arith.constant 0 : index
    %193 = vector.load %arg12[%c40_88, %c0_89] : memref<64x64xf32, #tpu.memory_space<vmem>>, vector<8x64xf32>
    tpu.vector_store %arg12[%c40_88, %c0_89], %192 {strides = array<i32>} : memref<64x64xf32, #tpu.memory_space<vmem>>, vector<8x64xf32>,
    %cst_90 = arith.constant 2.500000e-01 : f32
    %194 = vector.broadcast %cst_90 : f32 to vector<8x64xf32>
    %195 = arith.mulf %188, %194 : vector<8x64xf32>
    %cst_91 = arith.constant 1.000000e+00 : f32
    %196 = vector.broadcast %cst_91 : f32 to vector<8x64xf32>
    %197 = arith.subf %196, %192 : vector<8x64xf32>
    %198 = arith.mulf %195, %197 : vector<8x64xf32>
    %199 = vector.extract_strided_slice %127 {offsets = [48, 0], sizes = [8, 64], strides = [1, 1]} : vector<64x64xf32> to vector<8x64xf32>
    %200 = arith.addf %198, %199 : vector<8x64xf32>
    %cst_92 = arith.constant 5.000000e-01 : f32
    %201 = vector.broadcast %cst_92 : f32 to vector<8x64xf32>
    %202 = arith.cmpf ogt, %200, %201 : vector<8x64xf32>
    %203 = arith.extui %202 : vector<8x64xi1> to vector<8x64xi32>
    %204 = arith.sitofp %203 : vector<8x64xi32> to vector<8x64xf32>
    %c48_93 = arith.constant 48 : index
    %c0_94 = arith.constant 0 : index
    %205 = vector.load %arg12[%c48_93, %c0_94] : memref<64x64xf32, #tpu.memory_space<vmem>>, vector<8x64xf32>
    tpu.vector_store %arg12[%c48_93, %c0_94], %204 {strides = array<i32>} : memref<64x64xf32, #tpu.memory_space<vmem>>, vector<8x64xf32>,
    %cst_95 = arith.constant 2.500000e-01 : f32
    %206 = vector.broadcast %cst_95 : f32 to vector<8x64xf32>
    %207 = arith.mulf %200, %206 : vector<8x64xf32>
    %cst_96 = arith.constant 1.000000e+00 : f32
    %208 = vector.broadcast %cst_96 : f32 to vector<8x64xf32>
    %209 = arith.subf %208, %204 : vector<8x64xf32>
    %210 = arith.mulf %207, %209 : vector<8x64xf32>
    %211 = vector.extract_strided_slice %127 {offsets = [56, 0], sizes = [8, 64], strides = [1, 1]} : vector<64x64xf32> to vector<8x64xf32>
    %212 = arith.addf %210, %211 : vector<8x64xf32>
    %cst_97 = arith.constant 5.000000e-01 : f32
    %213 = vector.broadcast %cst_97 : f32 to vector<8x64xf32>
    %214 = arith.cmpf ogt, %212, %213 : vector<8x64xf32>
    %215 = arith.extui %214 : vector<8x64xi1> to vector<8x64xi32>
    %216 = arith.sitofp %215 : vector<8x64xi32> to vector<8x64xf32>
    %c56_98 = arith.constant 56 : index
    %c0_99 = arith.constant 0 : index
    %217 = vector.load %arg12[%c56_98, %c0_99] : memref<64x64xf32, #tpu.memory_space<vmem>>, vector<8x64xf32>
    tpu.vector_store %arg12[%c56_98, %c0_99], %216 {strides = array<i32>} : memref<64x64xf32, #tpu.memory_space<vmem>>, vector<8x64xf32>,
    %c0_100 = arith.constant 0 : index
    %c0_101 = arith.constant 0 : index
    %218 = vector.load %arg12[%c0_100, %c0_101] : memref<64x64xf32, #tpu.memory_space<vmem>>, vector<64x64xf32>
    %c0_102 = arith.constant 0 : index
    %c0_103 = arith.constant 0 : index
    %219 = vector.load %arg6[%c0_102, %c0_103] : memref<64x32xf32, #tpu.memory_space<vmem>>, vector<64x32xf32>
    %cst_104 = arith.constant dense<0.000000e+00> : vector<64x32xf32>
    %220 = tpu.matmul %218, %219, %cst_104 {dimension_numbers = #tpu.dot_dimension_numbers<[1], [0], [0], [1], [0, 0, 1, 1], [], []>} : vector<64x64xf32>, vector<64x32xf32>, vector<64x32xf32> -> vector<64x32xf32>
    %c0_105 = arith.constant 0 : index
    %c0_106 = arith.constant 0 : index
    %221 = vector.load %arg7[%c0_105, %c0_106] : memref<1x32xf32, #tpu.memory_space<vmem>>, vector<1x32xf32>
    %222 = vector.broadcast %221 : vector<1x32xf32> to vector<64x32xf32>
    %223 = arith.addf %220, %222 : vector<64x32xf32>
    %c0_107 = arith.constant 0 : index
    %c0_108 = arith.constant 0 : index
    %224 = vector.load %arg8[%c0_107, %c0_108] : memref<1x32xf32, #tpu.memory_space<vmem>>, vector<1x32xf32>
    %c0_109 = arith.constant 0 : index
    %c0_110 = arith.constant 0 : index
    %225 = vector.load %arg9[%c0_109, %c0_110] : memref<1x32xf32, #tpu.memory_space<vmem>>, vector<1x32xf32>
    %cst_111 = arith.constant dense<0.000000e+00> : vector<64xf32>
    %226 = vector.multi_reduction <add>, %223, %cst_111 [1] : vector<64x32xf32> to vector<64xf32>
    %227 = vector.shape_cast %226 : vector<64xf32> to vector<64x1xf32>
    %cst_112 = arith.constant 3.200000e+01 : f32
    %228 = vector.broadcast %cst_112 : f32 to vector<64x1xf32>
    %229 = arith.divf %227, %228 : vector<64x1xf32>
    %230 = vector.broadcast %229 : vector<64x1xf32> to vector<64x32xf32>
    %231 = arith.subf %223, %230 : vector<64x32xf32>
    %232 = arith.mulf %231, %231 : vector<64x32xf32>
    %cst_113 = arith.constant dense<0.000000e+00> : vector<64xf32>
    %233 = vector.multi_reduction <add>, %232, %cst_113 [1] : vector<64x32xf32> to vector<64xf32>
    %234 = vector.shape_cast %233 : vector<64xf32> to vector<64x1xf32>
    %cst_114 = arith.constant 3.200000e+01 : f32
    %235 = vector.broadcast %cst_114 : f32 to vector<64x1xf32>
    %236 = arith.divf %234, %235 : vector<64x1xf32>
    %237 = vector.broadcast %229 : vector<64x1xf32> to vector<64x32xf32>
    %238 = arith.subf %223, %237 : vector<64x32xf32>
    %cst_115 = arith.constant 9.99999974E-6 : f32
    %239 = vector.broadcast %cst_115 : f32 to vector<64x1xf32>
    %240 = arith.addf %236, %239 : vector<64x1xf32>
    %241 = math.rsqrt %240 : vector<64x1xf32>
    %242 = vector.broadcast %241 : vector<64x1xf32> to vector<64x32xf32>
    %243 = arith.mulf %238, %242 : vector<64x32xf32>
    %244 = vector.broadcast %224 : vector<1x32xf32> to vector<64x32xf32>
    %245 = arith.mulf %243, %244 : vector<64x32xf32>
    %246 = vector.broadcast %225 : vector<1x32xf32> to vector<64x32xf32>
    %247 = arith.addf %245, %246 : vector<64x32xf32>
    %248 = vector.extract_strided_slice %247 {offsets = [0, 0], sizes = [8, 32], strides = [1, 1]} : vector<64x32xf32> to vector<8x32xf32>
    %c0_116 = arith.constant 0 : index
    %c0_117 = arith.constant 0 : index
    %c0_118 = arith.constant 0 : index
    %249 = vector.load %arg10[%c0_116, %c0_117, %c0_118] : memref<8x8x32xf32, #tpu.memory_space<vmem>>, vector<1x8x32xf32>
    %250 = vector.shape_cast %249 : vector<1x8x32xf32> to vector<8x32xf32>
    %251 = vector.shape_cast %248 : vector<8x32xf32> to vector<1x8x32xf32>
    tpu.vector_store %arg10[%c0_116, %c0_117, %c0_118], %251 {strides = array<i32>} : memref<8x8x32xf32, #tpu.memory_space<vmem>>, vector<1x8x32xf32>,
    %252 = vector.extract_strided_slice %247 {offsets = [8, 0], sizes = [8, 32], strides = [1, 1]} : vector<64x32xf32> to vector<8x32xf32>
    %c1_119 = arith.constant 1 : index
    %c0_120 = arith.constant 0 : index
    %c0_121 = arith.constant 0 : index
    %253 = vector.load %arg10[%c1_119, %c0_120, %c0_121] : memref<8x8x32xf32, #tpu.memory_space<vmem>>, vector<1x8x32xf32>
    %254 = vector.shape_cast %253 : vector<1x8x32xf32> to vector<8x32xf32>
    %255 = vector.shape_cast %252 : vector<8x32xf32> to vector<1x8x32xf32>
    tpu.vector_store %arg10[%c1_119, %c0_120, %c0_121], %255 {strides = array<i32>} : memref<8x8x32xf32, #tpu.memory_space<vmem>>, vector<1x8x32xf32>,
    %256 = vector.extract_strided_slice %247 {offsets = [16, 0], sizes = [8, 32], strides = [1, 1]} : vector<64x32xf32> to vector<8x32xf32>
    %c2_122 = arith.constant 2 : index
    %c0_123 = arith.constant 0 : index
    %c0_124 = arith.constant 0 : index
    %257 = vector.load %arg10[%c2_122, %c0_123, %c0_124] : memref<8x8x32xf32, #tpu.memory_space<vmem>>, vector<1x8x32xf32>
    %258 = vector.shape_cast %257 : vector<1x8x32xf32> to vector<8x32xf32>
    %259 = vector.shape_cast %256 : vector<8x32xf32> to vector<1x8x32xf32>
    tpu.vector_store %arg10[%c2_122, %c0_123, %c0_124], %259 {strides = array<i32>} : memref<8x8x32xf32, #tpu.memory_space<vmem>>, vector<1x8x32xf32>,
    %260 = vector.extract_strided_slice %247 {offsets = [24, 0], sizes = [8, 32], strides = [1, 1]} : vector<64x32xf32> to vector<8x32xf32>
    %c3_125 = arith.constant 3 : index
    %c0_126 = arith.constant 0 : index
    %c0_127 = arith.constant 0 : index
    %261 = vector.load %arg10[%c3_125, %c0_126, %c0_127] : memref<8x8x32xf32, #tpu.memory_space<vmem>>, vector<1x8x32xf32>
    %262 = vector.shape_cast %261 : vector<1x8x32xf32> to vector<8x32xf32>
    %263 = vector.shape_cast %260 : vector<8x32xf32> to vector<1x8x32xf32>
    tpu.vector_store %arg10[%c3_125, %c0_126, %c0_127], %263 {strides = array<i32>} : memref<8x8x32xf32, #tpu.memory_space<vmem>>, vector<1x8x32xf32>,
    %264 = vector.extract_strided_slice %247 {offsets = [32, 0], sizes = [8, 32], strides = [1, 1]} : vector<64x32xf32> to vector<8x32xf32>
    %c4_128 = arith.constant 4 : index
    %c0_129 = arith.constant 0 : index
    %c0_130 = arith.constant 0 : index
    %265 = vector.load %arg10[%c4_128, %c0_129, %c0_130] : memref<8x8x32xf32, #tpu.memory_space<vmem>>, vector<1x8x32xf32>
    %266 = vector.shape_cast %265 : vector<1x8x32xf32> to vector<8x32xf32>
    %267 = vector.shape_cast %264 : vector<8x32xf32> to vector<1x8x32xf32>
    tpu.vector_store %arg10[%c4_128, %c0_129, %c0_130], %267 {strides = array<i32>} : memref<8x8x32xf32, #tpu.memory_space<vmem>>, vector<1x8x32xf32>,
    %268 = vector.extract_strided_slice %247 {offsets = [40, 0], sizes = [8, 32], strides = [1, 1]} : vector<64x32xf32> to vector<8x32xf32>
    %c5_131 = arith.constant 5 : index
    %c0_132 = arith.constant 0 : index
    %c0_133 = arith.constant 0 : index
    %269 = vector.load %arg10[%c5_131, %c0_132, %c0_133] : memref<8x8x32xf32, #tpu.memory_space<vmem>>, vector<1x8x32xf32>
    %270 = vector.shape_cast %269 : vector<1x8x32xf32> to vector<8x32xf32>
    %271 = vector.shape_cast %268 : vector<8x32xf32> to vector<1x8x32xf32>
    tpu.vector_store %arg10[%c5_131, %c0_132, %c0_133], %271 {strides = array<i32>} : memref<8x8x32xf32, #tpu.memory_space<vmem>>, vector<1x8x32xf32>,
    %272 = vector.extract_strided_slice %247 {offsets = [48, 0], sizes = [8, 32], strides = [1, 1]} : vector<64x32xf32> to vector<8x32xf32>
    %c6_134 = arith.constant 6 : index
    %c0_135 = arith.constant 0 : index
    %c0_136 = arith.constant 0 : index
    %273 = vector.load %arg10[%c6_134, %c0_135, %c0_136] : memref<8x8x32xf32, #tpu.memory_space<vmem>>, vector<1x8x32xf32>
    %274 = vector.shape_cast %273 : vector<1x8x32xf32> to vector<8x32xf32>
    %275 = vector.shape_cast %272 : vector<8x32xf32> to vector<1x8x32xf32>
    tpu.vector_store %arg10[%c6_134, %c0_135, %c0_136], %275 {strides = array<i32>} : memref<8x8x32xf32, #tpu.memory_space<vmem>>, vector<1x8x32xf32>,
    %276 = vector.extract_strided_slice %247 {offsets = [56, 0], sizes = [8, 32], strides = [1, 1]} : vector<64x32xf32> to vector<8x32xf32>
    %c7_137 = arith.constant 7 : index
    %c0_138 = arith.constant 0 : index
    %c0_139 = arith.constant 0 : index
    %277 = vector.load %arg10[%c7_137, %c0_138, %c0_139] : memref<8x8x32xf32, #tpu.memory_space<vmem>>, vector<1x8x32xf32>
    %278 = vector.shape_cast %277 : vector<1x8x32xf32> to vector<8x32xf32>
    %279 = vector.shape_cast %276 : vector<8x32xf32> to vector<1x8x32xf32>
    tpu.vector_store %arg10[%c7_137, %c0_138, %c0_139], %279 {strides = array<i32>} : memref<8x8x32xf32, #tpu.memory_space<vmem>>, vector<1x8x32xf32>,
    return
  }
  func.func @transform_0(%arg0: i32) -> (i32, i32, i32) {
    %c0_i32 = arith.constant 0 : i32
    %c0_i32_0 = arith.constant 0 : i32
    %c0_i32_1 = arith.constant 0 : i32
    return %c0_i32, %arg0, %c0_i32_0 : i32, i32, i32
  }
  func.func @transform_1(%arg0: i32) -> (i32, i32) {
    %c0_i32 = arith.constant 0 : i32
    %c0_i32_0 = arith.constant 0 : i32
    %c0_i32_1 = arith.constant 0 : i32
    return %c0_i32, %c0_i32_0 : i32, i32
  }
  func.func @transform_2(%arg0: i32) -> (i32, i32) {
    %c0_i32 = arith.constant 0 : i32
    %c0_i32_0 = arith.constant 0 : i32
    %c0_i32_1 = arith.constant 0 : i32
    return %c0_i32, %c0_i32_0 : i32, i32
  }
  func.func @transform_3(%arg0: i32) -> (i32, i32) {
    %c0_i32 = arith.constant 0 : i32
    %c0_i32_0 = arith.constant 0 : i32
    %c0_i32_1 = arith.constant 0 : i32
    return %c0_i32, %c0_i32_0 : i32, i32
  }
  func.func @transform_4(%arg0: i32) -> (i32, i32) {
    %c0_i32 = arith.constant 0 : i32
    %c0_i32_0 = arith.constant 0 : i32
    %c0_i32_1 = arith.constant 0 : i32
    return %c0_i32, %c0_i32_0 : i32, i32
  }
  func.func @transform_5(%arg0: i32) -> (i32, i32) {
    %c0_i32 = arith.constant 0 : i32
    %c0_i32_0 = arith.constant 0 : i32
    %c0_i32_1 = arith.constant 0 : i32
    return %c0_i32, %c0_i32_0 : i32, i32
  }
  func.func @transform_6(%arg0: i32) -> (i32, i32) {
    %c0_i32 = arith.constant 0 : i32
    %c0_i32_0 = arith.constant 0 : i32
    %c0_i32_1 = arith.constant 0 : i32
    return %c0_i32, %c0_i32_0 : i32, i32
  }
  func.func @transform_7(%arg0: i32) -> (i32, i32) {
    %c0_i32 = arith.constant 0 : i32
    %c0_i32_0 = arith.constant 0 : i32
    %c0_i32_1 = arith.constant 0 : i32
    return %c0_i32, %c0_i32_0 : i32, i32
  }
  func.func @transform_8(%arg0: i32) -> (i32, i32) {
    %c0_i32 = arith.constant 0 : i32
    %c0_i32_0 = arith.constant 0 : i32
    %c0_i32_1 = arith.constant 0 : i32
    return %c0_i32, %c0_i32_0 : i32, i32
  }
  func.func @transform_9(%arg0: i32) -> (i32, i32, i32) {
    %c0_i32 = arith.constant 0 : i32
    %c0_i32_0 = arith.constant 0 : i32
    %c0_i32_1 = arith.constant 0 : i32
    return %c0_i32, %arg0, %c0_i32_0 : i32, i32, i32
  }
}

</mosaic_0001>

<llo_original>
// kernel: tpu_custom_call.1
$region0: #{tpu_custom_call.1}
  #allocation0 [shape = 'u32[]', space=smem, size = 0x4, offset = 0x4, fixed_abs, tag = 'smem constant byte address 0x4 - core index']
  #allocation1 [shape = 'u32[144,128]{1,0:T(1,128)}', space=vmem, size = 0x12000, scoped, tag = 'internal scratch']
  #allocation2 [shape = 'f32[64,32]{1,0:T(8,128)}', space=vmem, size = 0x8000, scoped, tag = 'scratch operand']
  #allocation3 [shape = 'f32[64,64]{1,0:T(8,128)}', space=vmem, size = 0x8000, scoped, tag = 'scratch operand']
  %s0 = inlined_call_operand.hbm [shape: f32[8,16,32], index: 0, kind: input, shape index: {}]
  %s1 = inlined_call_operand.vmem [shape: f32[32,64], index: 1, kind: input, shape index: {}]
  %s2 = inlined_call_operand.vmem [shape: f32[1,64], index: 2, kind: input, shape index: {}]
  %s3 = inlined_call_operand.vmem [shape: f32[1,64], index: 3, kind: input, shape index: {}]
  %s4 = inlined_call_operand.vmem [shape: f32[1,64], index: 4, kind: input, shape index: {}]
  %s5 = inlined_call_operand.vmem [shape: f32[64,32], index: 5, kind: input, shape index: {}]
  %s6 = inlined_call_operand.vmem [shape: f32[1,32], index: 6, kind: input, shape index: {}]
  %s7 = inlined_call_operand.vmem [shape: f32[1,32], index: 7, kind: input, shape index: {}]
  %s8 = inlined_call_operand.vmem [shape: f32[1,32], index: 8, kind: input, shape index: {}]
  %s9 = inlined_call_operand.hbm [shape: f32[8,16,32], index: 9, kind: output, shape index: {}]
  %s10 = sld [smem:[#allocation0]]
  $region73: #{tpu_custom_call.1} parent=0
    _
  %s12 = ssub.s32 1, %s10
  %s13 = scalar_select 0, %s12, %s10
  $region1: #{tpu_custom_call.1} parent=0
    #allocation4 [shape = 'u8[65536]{0}', space=vmem, size = 0x10000, scoped, tag = 'input window, operand 0']
    #allocation5 [shape = 's32[2]{0}', space=sflag, size = 0x8, scoped, tag = 'scoped memory for tpu_custom_call.1']
    #allocation6 [shape = 's32[2]{0}', space=sflag, size = 0x8, scoped, tag = 'scoped memory for tpu_custom_call.1']
    #allocation7 [shape = 'u8[65536]{0}', space=vmem, size = 0x10000, scoped, tag = 'output window, operand 0']
    %14 = vsyncpa [#allocation5], 0
    %s15 = scalar_lea.sflag [#allocation5], 1
    %16 = vsyncpa %s15, 0
    %17 = vsyncpa [#allocation6], 0
    %s18 = scalar_lea.sflag [#allocation6], 1
    %19 = vsyncpa %s18, 0
    loop: start=0, step=1, limit=4
    $region2: #{tpu_custom_call.1} parent=1 // loop_pre_header
      _
    $region3: #{tpu_custom_call.1} parent=1 // loop_header
      %s21 = sphi 0, %s25
      %p22 = scmp.ge.s32.totalorder %s21, 4
      %s31 = sphi 0, %s33
      %s34 = sphi 0, %s31
      %s35 = sphi 0, %s34
      %s51 = sphi 0, %s35
      %s55 = sphi 0, %s55
      %s57 = sphi 0, %s55
      %s58 = sphi 0, %s57
      %s72 = sphi 0, %s58
      %s76 = sphi 0, %s76
      %s78 = sphi 0, %s76
      %s79 = sphi 0, %s78
      %s93 = sphi 0, %s79
      %s97 = sphi 0, %s97
      %s99 = sphi 0, %s97
      %s100 = sphi 0, %s99
      %s114 = sphi 0, %s100
      %s118 = sphi 0, %s118
      %s120 = sphi 0, %s118
      %s121 = sphi 0, %s120
      %s135 = sphi 0, %s121
      %s139 = sphi 0, %s139
      %s141 = sphi 0, %s139
      %s142 = sphi 0, %s141
      %s156 = sphi 0, %s142
      %s160 = sphi 0, %s160
      %s162 = sphi 0, %s160
      %s163 = sphi 0, %s162
      %s177 = sphi 0, %s163
      %s181 = sphi 0, %s181
      %s183 = sphi 0, %s181
      %s184 = sphi 0, %s183
      %s198 = sphi 0, %s184
      %s202 = sphi 0, %s202
      %s204 = sphi 0, %s202
      %s205 = sphi 0, %s204
      %s219 = sphi 0, %s205
      %s225 = sphi 0, %s227
      %s228 = sphi 0, %s225
      %s229 = sphi 0, %s228
      %s245 = sphi 0, %s229
    $region4: #{tpu_custom_call.1} parent=1 // loop_header_branch
      %24 = sbr.rel (%p22) target = $region8
    $region5: #{tpu_custom_call.1} parent=1 // loop_body
      %s26 = ssub.s32 %s21, 1
      %s27 = ssub.s32 %s21, 2
      %s28 = sadd.s32 %s21, 1
      %s29 = ssub.s32 %s21, %s28
      %p30 = scmp.eq.s32.totalorder %s29, 0
      %s32 = sadd.s32 %s31, 1
      %s33 = scalar_select %p30, %s31, %s32
      %p36 = pneg %p30
      %p37 = scmp.eq.s32.totalorder %s21, 1
      %p38 = por %p36, %p37
      %p39 = scmp.ne.s32.totalorder %s31, %s34
      %p40 = scmp.eq.s32.totalorder %s21, 0
      %p41 = por %p39, %p40
      %p42 = scmp.ne.s32.totalorder %s31, %s34
      %p43 = scmp.eq.s32.totalorder %s26, 1
      %p44 = por %p42, %p43
      %p45 = scmp.ne.s32.totalorder %s34, %s35
      %p46 = scmp.eq.s32.totalorder %s26, 0
      %p47 = por %p45, %p46
      %p48 = scmp.ne.s32.totalorder %s34, %s35
      %p49 = scmp.eq.s32.totalorder %s27, 1
      %p50 = por %p48, %p49
      %p52 = scmp.ne.s32.totalorder %s35, %s51
      %p53 = scmp.eq.s32.totalorder %s27, 0
      %p54 = por %p52, %p53
      %s56 = sadd.s32 %s55, 1
      %p59 = scmp.eq.s32.totalorder %s21, 1
      %p60 = scmp.ne.s32.totalorder %s55, %s57
      %p61 = scmp.eq.s32.totalorder %s21, 0
      %p62 = por %p60, %p61
      %p63 = scmp.ne.s32.totalorder %s55, %s57
      %p64 = scmp.eq.s32.totalorder %s26, 1
      %p65 = por %p63, %p64
      %p66 = scmp.ne.s32.totalorder %s57, %s58
      %p67 = scmp.eq.s32.totalorder %s26, 0
      %p68 = por %p66, %p67
      %p69 = scmp.ne.s32.totalorder %s57, %s58
      %p70 = scmp.eq.s32.totalorder %s27, 1
      %p71 = por %p69, %p70
      %p73 = scmp.ne.s32.totalorder %s58, %s72
      %p74 = scmp.eq.s32.totalorder %s27, 0
      %p75 = por %p73, %p74
      %s77 = sadd.s32 %s76, 1
      %p80 = scmp.eq.s32.totalorder %s21, 1
      %p81 = scmp.ne.s32.totalorder %s76, %s78
      %p82 = scmp.eq.s32.totalorder %s21, 0
      %p83 = por %p81, %p82
      %p84 = scmp.ne.s32.totalorder %s76, %s78
      %p85 = scmp.eq.s32.totalorder %s26, 1
      %p86 = por %p84, %p85
      %p87 = scmp.ne.s32.totalorder %s78, %s79
      %p88 = scmp.eq.s32.totalorder %s26, 0
      %p89 = por %p87, %p88
      %p90 = scmp.ne.s32.totalorder %s78, %s79
      %p91 = scmp.eq.s32.totalorder %s27, 1
      %p92 = por %p90, %p91
      %p94 = scmp.ne.s32.totalorder %s79, %s93
      %p95 = scmp.eq.s32.totalorder %s27, 0
      %p96 = por %p94, %p95
      %s98 = sadd.s32 %s97, 1
      %p101 = scmp.eq.s32.totalorder %s21, 1
      %p102 = scmp.ne.s32.totalorder %s97, %s99
      %p103 = scmp.eq.s32.totalorder %s21, 0
      %p104 = por %p102, %p103
      %p105 = scmp.ne.s32.totalorder %s97, %s99
      %p106 = scmp.eq.s32.totalorder %s26, 1
      %p107 = por %p105, %p106
      %p108 = scmp.ne.s32.totalorder %s99, %s100
      %p109 = scmp.eq.s32.totalorder %s26, 0
      %p110 = por %p108, %p109
      %p111 = scmp.ne.s32.totalorder %s99, %s100
      %p112 = scmp.eq.s32.totalorder %s27, 1
      %p113 = por %p111, %p112
      %p115 = scmp.ne.s32.totalorder %s100, %s114
      %p116 = scmp.eq.s32.totalorder %s27, 0
      %p117 = por %p115, %p116
      %s119 = sadd.s32 %s118, 1
      %p122 = scmp.eq.s32.totalorder %s21, 1
      %p123 = scmp.ne.s32.totalorder %s118, %s120
      %p124 = scmp.eq.s32.totalorder %s21, 0
      %p125 = por %p123, %p124
      %p126 = scmp.ne.s32.totalorder %s118, %s120
      %p127 = scmp.eq.s32.totalorder %s26, 1
      %p128 = por %p126, %p127
      %p129 = scmp.ne.s32.totalorder %s120, %s121
      %p130 = scmp.eq.s32.totalorder %s26, 0
      %p131 = por %p129, %p130
      %p132 = scmp.ne.s32.totalorder %s120, %s121
      %p133 = scmp.eq.s32.totalorder %s27, 1
      %p134 = por %p132, %p133
      %p136 = scmp.ne.s32.totalorder %s121, %s135
      %p137 = scmp.eq.s32.totalorder %s27, 0
      %p138 = por %p136, %p137
      %s140 = sadd.s32 %s139, 1
      %p143 = scmp.eq.s32.totalorder %s21, 1
      %p144 = scmp.ne.s32.totalorder %s139, %s141
      %p145 = scmp.eq.s32.totalorder %s21, 0
      %p146 = por %p144, %p145
      %p147 = scmp.ne.s32.totalorder %s139, %s141
      %p148 = scmp.eq.s32.totalorder %s26, 1
      %p149 = por %p147, %p148
      %p150 = scmp.ne.s32.totalorder %s141, %s142
      %p151 = scmp.eq.s32.totalorder %s26, 0
      %p152 = por %p150, %p151
      %p153 = scmp.ne.s32.totalorder %s141, %s142
      %p154 = scmp.eq.s32.totalorder %s27, 1
      %p155 = por %p153, %p154
      %p157 = scmp.ne.s32.totalorder %s142, %s156
      %p158 = scmp.eq.s32.totalorder %s27, 0
      %p159 = por %p157, %p158
      %s161 = sadd.s32 %s160, 1
      %p164 = scmp.eq.s32.totalorder %s21, 1
      %p165 = scmp.ne.s32.totalorder %s160, %s162
      %p166 = scmp.eq.s32.totalorder %s21, 0
      %p167 = por %p165, %p166
      %p168 = scmp.ne.s32.totalorder %s160, %s162
      %p169 = scmp.eq.s32.totalorder %s26, 1
      %p170 = por %p168, %p169
      %p171 = scmp.ne.s32.totalorder %s162, %s163
      %p172 = scmp.eq.s32.totalorder %s26, 0
      %p173 = por %p171, %p172
      %p174 = scmp.ne.s32.totalorder %s162, %s163
      %p175 = scmp.eq.s32.totalorder %s27, 1
      %p176 = por %p174, %p175
      %p178 = scmp.ne.s32.totalorder %s163, %s177
      %p179 = scmp.eq.s32.totalorder %s27, 0
      %p180 = por %p178, %p179
      %s182 = sadd.s32 %s181, 1
      %p185 = scmp.eq.s32.totalorder %s21, 1
      %p186 = scmp.ne.s32.totalorder %s181, %s183
      %p187 = scmp.eq.s32.totalorder %s21, 0
      %p188 = por %p186, %p187
      %p189 = scmp.ne.s32.totalorder %s181, %s183
      %p190 = scmp.eq.s32.totalorder %s26, 1
      %p191 = por %p189, %p190
      %p192 = scmp.ne.s32.totalorder %s183, %s184
      %p193 = scmp.eq.s32.totalorder %s26, 0
      %p194 = por %p192, %p193
      %p195 = scmp.ne.s32.totalorder %s183, %s184
      %p196 = scmp.eq.s32.totalorder %s27, 1
      %p197 = por %p195, %p196
      %p199 = scmp.ne.s32.totalorder %s184, %s198
      %p200 = scmp.eq.s32.totalorder %s27, 0
      %p201 = por %p199, %p200
      %s203 = sadd.s32 %s202, 1
      %p206 = scmp.eq.s32.totalorder %s21, 1
      %p207 = scmp.ne.s32.totalorder %s202, %s204
      %p208 = scmp.eq.s32.totalorder %s21, 0
      %p209 = por %p207, %p208
      %p210 = scmp.ne.s32.totalorder %s202, %s204
      %p211 = scmp.eq.s32.totalorder %s26, 1
      %p212 = por %p210, %p211
      %p213 = scmp.ne.s32.totalorder %s204, %s205
      %p214 = scmp.eq.s32.totalorder %s26, 0
      %p215 = por %p213, %p214
      %p216 = scmp.ne.s32.totalorder %s204, %s205
      %p217 = scmp.eq.s32.totalorder %s27, 1
      %p218 = por %p216, %p217
      %p220 = scmp.ne.s32.totalorder %s205, %s219
      %p221 = scmp.eq.s32.totalorder %s27, 0
      %p222 = por %p220, %p221
      %s223 = ssub.s32 %s21, %s28
      %p224 = scmp.eq.s32.totalorder %s223, 0
      %s226 = sadd.s32 %s225, 1
      %s227 = scalar_select %p224, %s225, %s226
      %p230 = pneg %p224
      %p231 = scmp.eq.s32.totalorder %s21, 1
      %p232 = por %p230, %p231
      %p233 = scmp.ne.s32.totalorder %s225, %s228
      %p234 = scmp.eq.s32.totalorder %s21, 0
      %p235 = por %p233, %p234
      %p236 = scmp.ne.s32.totalorder %s225, %s228
      %p237 = scmp.eq.s32.totalorder %s26, 1
      %p238 = por %p236, %p237
      %p239 = scmp.ne.s32.totalorder %s228, %s229
      %p240 = scmp.eq.s32.totalorder %s26, 0
      %p241 = por %p239, %p240
      %p242 = scmp.ne.s32.totalorder %s228, %s229
      %p243 = scmp.eq.s32.totalorder %s27, 1
      %p244 = por %p242, %p243
      %p246 = scmp.ne.s32.totalorder %s229, %s245
      %p247 = scmp.eq.s32.totalorder %s27, 0
      %p248 = por %p246, %p247
      %p249 = scmp.le.s32.totalorder 1, %s21
      %p250 = scmp.lt.s32.totalorder %s21, 3
      %p251 = pnand %p249, %p250
      %p252 = pneg %p251
      // Predicated region
      $region9: #{tpu_custom_call.1} parent=5 // pred_check
        _
      $region10: #{tpu_custom_call.1} parent=5 // pred_check_branch
        %254 = sbr.rel (%p251) target = $region12
      $region11: #{tpu_custom_call.1} parent=5 // pred_region
        %s255 = ssub.s32 %s21, 1
        // Predicated region
        $region13: #{tpu_custom_call.1} parent=11 // pred_check
          %p256 = pneg %p68
        $region14: #{tpu_custom_call.1} parent=11 // pred_check_branch
          %258 = sbr.rel (%p256) target = $region16
        $region15: #{tpu_custom_call.1} parent=11 // pred_region
          _
        $region16: #{tpu_custom_call.1} parent=11 // pred_fallthru
          _
        // Predicated region
        $region17: #{tpu_custom_call.1} parent=11 // pred_check
          %p259 = pneg %p89
        $region18: #{tpu_custom_call.1} parent=11 // pred_check_branch
          %261 = sbr.rel (%p259) target = $region20
        $region19: #{tpu_custom_call.1} parent=11 // pred_region
          _
        $region20: #{tpu_custom_call.1} parent=11 // pred_fallthru
          _
        // Predicated region
        $region21: #{tpu_custom_call.1} parent=11 // pred_check
          %p262 = pneg %p110
        $region22: #{tpu_custom_call.1} parent=11 // pred_check_branch
          %264 = sbr.rel (%p262) target = $region24
        $region23: #{tpu_custom_call.1} parent=11 // pred_region
          _
        $region24: #{tpu_custom_call.1} parent=11 // pred_fallthru
          _
        // Predicated region
        $region25: #{tpu_custom_call.1} parent=11 // pred_check
          %p265 = pneg %p131
        $region26: #{tpu_custom_call.1} parent=11 // pred_check_branch
          %267 = sbr.rel (%p265) target = $region28
        $region27: #{tpu_custom_call.1} parent=11 // pred_region
          _
        $region28: #{tpu_custom_call.1} parent=11 // pred_fallthru
          _
        // Predicated region
        $region29: #{tpu_custom_call.1} parent=11 // pred_check
          %p268 = pneg %p152
        $region30: #{tpu_custom_call.1} parent=11 // pred_check_branch
          %270 = sbr.rel (%p268) target = $region32
        $region31: #{tpu_custom_call.1} parent=11 // pred_region
          _
        $region32: #{tpu_custom_call.1} parent=11 // pred_fallthru
          _
        // Predicated region
        $region33: #{tpu_custom_call.1} parent=11 // pred_check
          %p271 = pneg %p173
        $region34: #{tpu_custom_call.1} parent=11 // pred_check_branch
          %273 = sbr.rel (%p271) target = $region36
        $region35: #{tpu_custom_call.1} parent=11 // pred_region
          _
        $region36: #{tpu_custom_call.1} parent=11 // pred_fallthru
          _
        // Predicated region
        $region37: #{tpu_custom_call.1} parent=11 // pred_check
          %p274 = pneg %p194
        $region38: #{tpu_custom_call.1} parent=11 // pred_check_branch
          %276 = sbr.rel (%p274) target = $region40
        $region39: #{tpu_custom_call.1} parent=11 // pred_region
          _
        $region40: #{tpu_custom_call.1} parent=11 // pred_fallthru
          _
        // Predicated region
        $region41: #{tpu_custom_call.1} parent=11 // pred_check
          %p277 = pneg %p215
        $region42: #{tpu_custom_call.1} parent=11 // pred_check_branch
          %279 = sbr.rel (%p277) target = $region44
        $region43: #{tpu_custom_call.1} parent=11 // pred_region
          _
        $region44: #{tpu_custom_call.1} parent=11 // pred_fallthru
          _
      $region12: #{tpu_custom_call.1} parent=5 // pred_fallthru
        _
      %p280 = scmp.lt.s32.totalorder %s21, 2
      // Predicated region
      $region45: #{tpu_custom_call.1} parent=5 // pred_check
        %p281 = pneg %p280
      $region46: #{tpu_custom_call.1} parent=5 // pred_check_branch
        %283 = sbr.rel (%p281) target = $region48
      $region47: #{tpu_custom_call.1} parent=5 // pred_region
        // Predicated region
        $region49: #{tpu_custom_call.1} parent=47 // pred_check
          %p284 = pneg %p41
        $region50: #{tpu_custom_call.1} parent=47 // pred_check_branch
          %286 = sbr.rel (%p284) target = $region52
        $region51: #{tpu_custom_call.1} parent=47 // pred_region
          %s287 = sand.u32 %s31, 1
          %s288 = scalar_lea.sflag [#allocation5], %s287
          %s289 = sand.u32 %s31, 1
          %s290 = smul.addr %s289, 64
          %s291 = scalar_lea.vmem [#allocation4], %s290
          %s293 = ssub.s32 1024, 1024
          %294 = vsyncadd %s288, %s293
          %s295 = smul.addr %s21, 128
          %s296 = scalar_lea.hbm %s0, %s295
          %s297 = sshll.u32 %s291, 4
          %s298 = int_to_ptr.vmem [resolvable:$true] %s297
          %303 = dma.hbm_to_vmem [thread:$0]  %s296, 1024, %s298, %s288, 256, 128, 8
        $region52: #{tpu_custom_call.1} parent=47 // pred_fallthru
          _
      $region48: #{tpu_custom_call.1} parent=5 // pred_fallthru
        _
      %p304 = scmp.le.s32.totalorder 1, %s21
      %p305 = scmp.lt.s32.totalorder %s21, 3
      %p306 = pnand %p304, %p305
      %p307 = pneg %p306
      // Predicated region
      $region53: #{tpu_custom_call.1} parent=5 // pred_check
        _
      $region54: #{tpu_custom_call.1} parent=5 // pred_check_branch
        %309 = sbr.rel (%p306) target = $region56
      $region55: #{tpu_custom_call.1} parent=5 // pred_region
        %s310 = ssub.s32 %s21, 1
        %s311 = sand.u32 %s34, 1
        %s312 = scalar_lea.sflag [#allocation5], %s311
        %s313 = sand.u32 %s34, 1
        %s314 = smul.addr %s313, 64
        %s315 = scalar_lea.vmem [#allocation4], %s314
        // Predicated region
        $region57: #{tpu_custom_call.1} parent=55 // pred_check
          %p316 = pneg %p47
        $region58: #{tpu_custom_call.1} parent=55 // pred_check_branch
          %318 = sbr.rel (%p316) target = $region60
        $region59: #{tpu_custom_call.1} parent=55 // pred_region
          %319 = dma.done %s312, 1024
        $region60: #{tpu_custom_call.1} parent=55 // pred_fallthru
          _
        %s320 = sand.u32 %s34, 1
        %s321 = scalar_lea.sflag [#allocation5], %s320
        %s322 = sand.u32 %s34, 1
        %s323 = smul.addr %s322, 64
        %s324 = scalar_lea.vmem [#allocation4], %s323
        %p325 = pneg %p47
        %p326 = pneg %p44
        %p327 = pneg %p68
        %p328 = pneg %p65
        %p329 = pneg %p89
        %p330 = pneg %p86
        %p331 = pneg %p110
        %p332 = pneg %p107
        %p333 = pneg %p131
        %p334 = pneg %p128
        %p335 = pneg %p152
        %p336 = pneg %p149
        %p337 = pneg %p173
        %p338 = pneg %p170
        %p339 = pneg %p194
        %p340 = pneg %p191
        %p341 = pneg %p215
        %p342 = pneg %p212
        %p343 = pneg %p241
        %p344 = pneg %p238
        %s345 = sand.u32 %s228, 1
        %s346 = scalar_lea.sflag [#allocation6], %s345
        %s347 = sand.u32 %s228, 1
        %s348 = smul.addr %s347, 64
        %s349 = scalar_lea.vmem [#allocation7], %s348
        %v350 = vld [vmem:[%s315] sm:$0xff]
        %vm351 = vcmp.gt.f32.partialorder %v350, 0.5
        %v352 = vsel %vm351, 1, 0
        %v353 = vcvt.s32.f32 %v352
        %vm354 = vcmask 261120
        %355 = vst.msk [vmem:[#allocation2] sm:$0xff] %vm354, %v353
        %v356 = vmul.f32 %v350, 0.25
        %v357 = vsub.f32 1.0, %v353
        %v358 = vmul.f32 %v356, %v357
        %s359 = scalar_lea.vmem %s315, 8 [#allocation4]
        %v360 = vld [vmem:[%s359] sm:$0xff]
        %v361 = vadd.f32 %v358, %v360
        %vm362 = vcmp.gt.f32.partialorder %v361, 0.5
        %v363 = vsel %vm362, 1, 0
        %v364 = vcvt.s32.f32 %v363
        %365 = vst.msk [vmem:[#allocation2 + $0x8] sm:$0xff] %vm354, %v364
        %v366 = vmul.f32 %v361, 0.25
        %v367 = vsub.f32 1.0, %v364
        %v368 = vmul.f32 %v366, %v367
        %s369 = scalar_lea.vmem %s315, 16 [#allocation4]
        %v370 = vld [vmem:[%s369] sm:$0xff]
        %v371 = vadd.f32 %v368, %v370
        %vm372 = vcmp.gt.f32.partialorder %v371, 0.5
        %v373 = vsel %vm372, 1, 0
        %v374 = vcvt.s32.f32 %v373
        %375 = vst.msk [vmem:[#allocation2 + $0x10] sm:$0xff] %vm354, %v374
        %v376 = vmul.f32 %v371, 0.25
        %v377 = vsub.f32 1.0, %v374
        %v378 = vmul.f32 %v376, %v377
        %s379 = scalar_lea.vmem %s315, 24 [#allocation4]
        %v380 = vld [vmem:[%s379] sm:$0xff]
        %v381 = vadd.f32 %v378, %v380
        %vm382 = vcmp.gt.f32.partialorder %v381, 0.5
        %v383 = vsel %vm382, 1, 0
        %v384 = vcvt.s32.f32 %v383
        %385 = vst.msk [vmem:[#allocation2 + $0x18] sm:$0xff] %vm354, %v384
        %v386 = vmul.f32 %v381, 0.25
        %v387 = vsub.f32 1.0, %v384
        %v388 = vmul.f32 %v386, %v387
        %s389 = scalar_lea.vmem %s315, 32 [#allocation4]
        %v390 = vld [vmem:[%s389] sm:$0xff]
        %v391 = vadd.f32 %v388, %v390
        %vm392 = vcmp.gt.f32.partialorder %v391, 0.5
        %v393 = vsel %vm392, 1, 0
        %v394 = vcvt.s32.f32 %v393
        %395 = vst.msk [vmem:[#allocation2 + $0x20] sm:$0xff] %vm354, %v394
        %v396 = vmul.f32 %v391, 0.25
        %v397 = vsub.f32 1.0, %v394
        %v398 = vmul.f32 %v396, %v397
        %s399 = scalar_lea.vmem %s315, 40 [#allocation4]
        %v400 = vld [vmem:[%s399] sm:$0xff]
        %v401 = vadd.f32 %v398, %v400
        %vm402 = vcmp.gt.f32.partialorder %v401, 0.5
        %v403 = vsel %vm402, 1, 0
        %v404 = vcvt.s32.f32 %v403
        %405 = vst.msk [vmem:[#allocation2 + $0x28] sm:$0xff] %vm354, %v404
        %v406 = vmul.f32 %v401, 0.25
        %v407 = vsub.f32 1.0, %v404
        %v408 = vmul.f32 %v406, %v407
        %s409 = scalar_lea.vmem %s315, 48 [#allocation4]
        %v410 = vld [vmem:[%s409] sm:$0xff]
        %v411 = vadd.f32 %v408, %v410
        %vm412 = vcmp.gt.f32.partialorder %v411, 0.5
        %v413 = vsel %vm412, 1, 0
        %v414 = vcvt.s32.f32 %v413
        %415 = vst.msk [vmem:[#allocation2 + $0x30] sm:$0xff] %vm354, %v414
        %v416 = vmul.f32 %v411, 0.25
        %v417 = vsub.f32 1.0, %v414
        %v418 = vmul.f32 %v416, %v417
        %s419 = scalar_lea.vmem %s315, 56 [#allocation4]
        %v420 = vld [vmem:[%s419] sm:$0xff]
        %v421 = vadd.f32 %v418, %v420
        %vm422 = vcmp.gt.f32.partialorder %v421, 0.5
        %v423 = vsel %vm422, 1, 0
        %v424 = vcvt.s32.f32 %v423
        %425 = vst.msk [vmem:[#allocation2 + $0x38] sm:$0xff] %vm354, %v424
        %v426 = vld [vmem:[#allocation2] sm:$0xff]
        %v427 = vld [vmem:[#allocation2 + $0x8] sm:$0xff]
        %v428 = vld [vmem:[#allocation2 + $0x10] sm:$0xff]
        %v429 = vld [vmem:[#allocation2 + $0x18] sm:$0xff]
        %v430 = vld [vmem:[#allocation2 + $0x20] sm:$0xff]
        %v431 = vld [vmem:[#allocation2 + $0x28] sm:$0xff]
        %v432 = vld [vmem:[#allocation2 + $0x30] sm:$0xff]
        %v433 = vld [vmem:[#allocation2 + $0x38] sm:$0xff]
        %v434 = vld [vmem:[%s1] sm:$0xff]
        %v435 = vld [vmem:[%s1 + $0x8] sm:$0xff]
        %v436 = vld [vmem:[%s1 + $0x10] sm:$0xff]
        %v437 = vld [vmem:[%s1 + $0x18] sm:$0xff]
        %v438 = vld [vmem:[%s2] sm:$0x1]
        %v440 = vlaneseq
        %v441 = vshrl.u32 %v440, 7
        %v442 = vsub.s32 0, %v441
        %v443 = vrot.slane %v438, %v442
        %v446 = vsel %vm354, %v426, 0
        %v449 = vsel %vm354, %v427, 0
        %v452 = vsel %vm354, %v428, 0
        %v455 = vsel %vm354, %v429, 0
        %v458 = vsel %vm354, %v430, 0
        %v461 = vsel %vm354, %v431, 0
        %v464 = vsel %vm354, %v432, 0
        %v467 = vsel %vm354, %v433, 0
        %469 = vmatprep.subr.mxu0 0.0
        %470 = vmatpush1.msra.mxu0 %v434
        %471 = vmatprep.subr.mxu0 0.0
        %472 = vmatpush1.msra.mxu0 %v435
        %473 = vmatprep.subr.mxu0 0.0
        %474 = vmatpush1.msra.mxu0 %v436
        %475 = vmatprep.subr.mxu0 0.0
        %476 = vmatpush1.msra.mxu0 %v437
        %477 = vmatprep.subr.mxu0 0.0
        %478 = vmatpush1.msra.mxu0 0.0
        %479 = vmatprep.subr.mxu0 0.0
        %480 = vmatpush1.msra.mxu0 0.0
        %481 = vmatprep.subr.mxu0 0.0
        %482 = vmatpush1.msra.mxu0 0.0
        %483 = vmatprep.subr.mxu0 0.0
        %484 = vmatpush1.msra.mxu0 0.0
        %485 = vmatprep.subr.mxu0 0.0
        %486 = vmatpush1.msra.mxu0 0.0
        %487 = vmatprep.subr.mxu0 0.0
        %488 = vmatpush1.msra.mxu0 0.0
        %489 = vmatprep.subr.mxu0 0.0
        %490 = vmatpush1.msra.mxu0 0.0
        %491 = vmatprep.subr.mxu0 0.0
        %492 = vmatpush1.msra.mxu0 0.0
        %493 = vmatprep.subr.mxu0 0.0
        %494 = vmatpush1.msra.mxu0 0.0
        %495 = vmatprep.subr.mxu0 0.0
        %496 = vmatpush1.msra.mxu0 0.0
        %497 = vmatprep.subr.mxu0 0.0
        %498 = vmatpush1.msra.mxu0 0.0
        %499 = vmatprep.subr.mxu0 0.0
        %500 = vmatpush1.msra.mxu0 0.0
        %501 = vmatprep.subr.mxu0 0.0
        %502 = vmatpush1.msra.mxu0 0.0
        %503 = vmatprep.subr.mxu0 0.0
        %504 = vmatpush1.msra.mxu0 0.0
        %505 = vmatprep.subr.mxu0 0.0
        %506 = vmatpush1.msra.mxu0 0.0
        %507 = vmatprep.subr.mxu0 0.0
        %508 = vmatpush1.msra.mxu0 0.0
        %509 = vmatprep.subr.mxu0 0.0
        %510 = vmatpush1.msra.mxu0 0.0
        %511 = vmatprep.subr.mxu0 0.0
        %512 = vmatpush1.msra.mxu0 0.0
        %513 = vmatprep.subr.mxu0 0.0
        %514 = vmatpush1.msra.mxu0 0.0
        %515 = vmatprep.subr.mxu0 0.0
        %516 = vmatpush1.msra.mxu0 0.0
        %517 = vmatprep.subr.mxu0 0.0
        %518 = vmatpush1.msra.mxu0 0.0
        %519 = vmatprep.subr.mxu0 0.0
        %520 = vmatpush1.msra.mxu0 0.0
        %521 = vmatprep.subr.mxu0 0.0
        %522 = vmatpush1.msra.mxu0 0.0
        %523 = vmatprep.subr.mxu0 0.0
        %524 = vmatpush1.msra.mxu0 0.0
        %525 = vmatprep.subr.mxu0 0.0
        %526 = vmatpush1.msra.mxu0 0.0
        %527 = vmatprep.subr.mxu0 0.0
        %528 = vmatpush1.msra.mxu0 0.0
        %529 = vmatprep.subr.mxu0 0.0
        %530 = vmatpush1.msra.mxu0 0.0
        %531 = vmatprep.subr.mxu0 0.0
        %532 = vmatpush1.msra.mxu0 0.0
        %533 = vmatprep.mubr.f32.mxu0 0.0
        %534 = vmatmul.mubr.f32.gmra.mrb[0].mxu0 %v446
        %v535 = vpop.f32.mrb[0].mxu0
        %v536 = vadd.f32 %v443, %v535
        %v537 = vpop.f32.mrb[0].mxu0
        %538 = vmatprep.mubr.f32.mxu0 0.0
        %539 = vmatmul.mubr.f32.gmra.mrb[0].mxu0 %v449
        %v540 = vpop.f32.mrb[0].mxu0
        %v541 = vadd.f32 %v443, %v540
        %v542 = vpop.f32.mrb[0].mxu0
        %543 = vmatprep.mubr.f32.mxu0 0.0
        %544 = vmatmul.mubr.f32.gmra.mrb[0].mxu0 %v452
        %v545 = vpop.f32.mrb[0].mxu0
        %v546 = vadd.f32 %v443, %v545
        %v547 = vpop.f32.mrb[0].mxu0
        %548 = vmatprep.mubr.f32.mxu0 0.0
        %549 = vmatmul.mubr.f32.gmra.mrb[0].mxu0 %v455
        %v550 = vpop.f32.mrb[0].mxu0
        %v551 = vadd.f32 %v443, %v550
        %v552 = vpop.f32.mrb[0].mxu0
        %553 = vmatprep.mubr.f32.mxu0 0.0
        %554 = vmatmul.mubr.f32.gmra.mrb[0].mxu0 %v458
        %v555 = vpop.f32.mrb[0].mxu0
        %v556 = vadd.f32 %v443, %v555
        %v557 = vpop.f32.mrb[0].mxu0
        %558 = vmatprep.mubr.f32.mxu0 0.0
        %559 = vmatmul.mubr.f32.gmra.mrb[0].mxu0 %v461
        %v560 = vpop.f32.mrb[0].mxu0
        %v561 = vadd.f32 %v443, %v560
        %v562 = vpop.f32.mrb[0].mxu0
        %563 = vmatprep.mubr.f32.mxu0 0.0
        %564 = vmatmul.mubr.f32.gmra.mrb[0].mxu0 %v464
        %v565 = vpop.f32.mrb[0].mxu0
        %v566 = vadd.f32 %v443, %v565
        %v567 = vpop.f32.mrb[0].mxu0
        %568 = vmatprep.mubr.f32.mxu0 0.0
        %569 = vmatmul.mubr.f32.gmra.mrb[0].mxu0 %v467
        %v570 = vpop.f32.mrb[0].mxu0
        %v571 = vadd.f32 %v443, %v570
        %v572 = vpop.f32.mrb[0].mxu0
        %573 = vdwg.mxu0
        %v574 = vld [vmem:[%s3] sm:$0x1]
        %v575 = vld [vmem:[%s4] sm:$0x1]
        %vm576 = vcmask 523264
        %v577 = vsel %vm576, %v536, 0.0
        %578 = vadd.xlane.f32.xlu0 %v577
        %v579 = vpop.xlane.xlu0 %578
        %v580 = vsel %vm576, %v541, 0.0
        %581 = vadd.xlane.f32.xlu0 %v580
        %v582 = vpop.xlane.xlu0 %581
        %v583 = vsel %vm576, %v546, 0.0
        %584 = vadd.xlane.f32.xlu0 %v583
        %v585 = vpop.xlane.xlu0 %584
        %v586 = vsel %vm576, %v551, 0.0
        %587 = vadd.xlane.f32.xlu0 %v586
        %v588 = vpop.xlane.xlu0 %587
        %v589 = vsel %vm576, %v556, 0.0
        %590 = vadd.xlane.f32.xlu0 %v589
        %v591 = vpop.xlane.xlu0 %590
        %v592 = vsel %vm576, %v561, 0.0
        %593 = vadd.xlane.f32.xlu0 %v592
        %v594 = vpop.xlane.xlu0 %593
        %v595 = vsel %vm576, %v566, 0.0
        %596 = vadd.xlane.f32.xlu0 %v595
        %v597 = vpop.xlane.xlu0 %596
        %v598 = vsel %vm576, %v571, 0.0
        %599 = vadd.xlane.f32.xlu0 %v598
        %v600 = vpop.xlane.xlu0 %599
        %v601 = vrcp.pop 64.0
        %v602 = vmul.f32 %v579, %v601
        %v603 = vmul.f32 %v582, %v601
        %v604 = vmul.f32 %v585, %v601
        %v605 = vmul.f32 %v588, %v601
        %v606 = vmul.f32 %v591, %v601
        %v607 = vmul.f32 %v594, %v601
        %v608 = vmul.f32 %v597, %v601
        %v609 = vmul.f32 %v600, %v601
        %v610 = vsub.f32 %v536, %v602
        %v611 = vsub.f32 %v541, %v603
        %v612 = vsub.f32 %v546, %v604
        %v613 = vsub.f32 %v551, %v605
        %v614 = vsub.f32 %v556, %v606
        %v615 = vsub.f32 %v561, %v607
        %v616 = vsub.f32 %v566, %v608
        %v617 = vsub.f32 %v571, %v609
        %v618 = vmul.f32 %v610, %v610
        %v619 = vmul.f32 %v611, %v611
        %v620 = vmul.f32 %v612, %v612
        %v621 = vmul.f32 %v613, %v613
        %v622 = vmul.f32 %v614, %v614
        %v623 = vmul.f32 %v615, %v615
        %v624 = vmul.f32 %v616, %v616
        %v625 = vmul.f32 %v617, %v617
        %v626 = vsel %vm576, %v618, 0.0
        %627 = vadd.xlane.f32.xlu0 %v626
        %v628 = vpop.xlane.xlu0 %627
        %v629 = vsel %vm576, %v619, 0.0
        %630 = vadd.xlane.f32.xlu0 %v629
        %v631 = vpop.xlane.xlu0 %630
        %v632 = vsel %vm576, %v620, 0.0
        %633 = vadd.xlane.f32.xlu0 %v632
        %v634 = vpop.xlane.xlu0 %633
        %v635 = vsel %vm576, %v621, 0.0
        %636 = vadd.xlane.f32.xlu0 %v635
        %v637 = vpop.xlane.xlu0 %636
        %v638 = vsel %vm576, %v622, 0.0
        %639 = vadd.xlane.f32.xlu0 %v638
        %v640 = vpop.xlane.xlu0 %639
        %v641 = vsel %vm576, %v623, 0.0
        %642 = vadd.xlane.f32.xlu0 %v641
        %v643 = vpop.xlane.xlu0 %642
        %v644 = vsel %vm576, %v624, 0.0
        %645 = vadd.xlane.f32.xlu0 %v644
        %v646 = vpop.xlane.xlu0 %645
        %v647 = vsel %vm576, %v625, 0.0
        %648 = vadd.xlane.f32.xlu0 %v647
        %v649 = vpop.xlane.xlu0 %648
        %v650 = vmul.f32 %v628, %v601
        %v651 = vmul.f32 %v631, %v601
        %v652 = vmul.f32 %v634, %v601
        %v653 = vmul.f32 %v637, %v601
        %v654 = vmul.f32 %v640, %v601
        %v655 = vmul.f32 %v643, %v601
        %v656 = vmul.f32 %v646, %v601
        %v657 = vmul.f32 %v649, %v601
        %v658 = vadd.f32 %v650, 1e-05
        %v659 = vadd.f32 %v651, 1e-05
        %v660 = vadd.f32 %v652, 1e-05
        %v661 = vadd.f32 %v653, 1e-05
        %v662 = vadd.f32 %v654, 1e-05
        %v663 = vadd.f32 %v655, 1e-05
        %v664 = vadd.f32 %v656, 1e-05
        %v665 = vadd.f32 %v657, 1e-05
        %v666 = vrsqrt.pop %v658
        %v667 = vrsqrt.pop %v659
        %v668 = vrsqrt.pop %v660
        %v669 = vrsqrt.pop %v661
        %v670 = vrsqrt.pop %v662
        %v671 = vrsqrt.pop %v663
        %v672 = vrsqrt.pop %v664
        %v673 = vrsqrt.pop %v665
        %v674 = vmul.f32 %v610, %v666
        %v675 = vmul.f32 %v611, %v667
        %v676 = vmul.f32 %v612, %v668
        %v677 = vmul.f32 %v613, %v669
        %v678 = vmul.f32 %v614, %v670
        %v679 = vmul.f32 %v615, %v671
        %v680 = vmul.f32 %v616, %v672
        %v681 = vmul.f32 %v617, %v673
        %v683 = vlaneseq
        %v684 = vshrl.u32 %v683, 7
        %v685 = vsub.s32 0, %v684
        %v686 = vrot.slane %v574, %v685
        %v688 = vmul.f32 %v674, %v686
        %v689 = vmul.f32 %v675, %v686
        %v690 = vmul.f32 %v676, %v686
        %v691 = vmul.f32 %v677, %v686
        %v692 = vmul.f32 %v678, %v686
        %v693 = vmul.f32 %v679, %v686
        %v694 = vmul.f32 %v680, %v686
        %v695 = vmul.f32 %v681, %v686
        %v697 = vlaneseq
        %v698 = vshrl.u32 %v697, 7
        %v699 = vsub.s32 0, %v698
        %v700 = vrot.slane %v575, %v699
        %v702 = vadd.f32 %v688, %v700
        %v703 = vadd.f32 %v689, %v700
        %v704 = vadd.f32 %v690, %v700
        %v705 = vadd.f32 %v691, %v700
        %v706 = vadd.f32 %v692, %v700
        %v707 = vadd.f32 %v693, %v700
        %v708 = vadd.f32 %v694, %v700
        %v709 = vadd.f32 %v695, %v700
        %vm710 = vcmp.gt.f32.partialorder %v702, 0.5
        %v711 = vsel %vm710, 1, 0
        %v712 = vcvt.s32.f32 %v711
        %713 = vst.msk [vmem:[#allocation3] sm:$0xff] %vm576, %v712
        %v714 = vmul.f32 %v702, 0.25
        %v715 = vsub.f32 1.0, %v712
        %v716 = vmul.f32 %v714, %v715
        %v717 = vadd.f32 %v716, %v703
        %vm718 = vcmp.gt.f32.partialorder %v717, 0.5
        %v719 = vsel %vm718, 1, 0
        %v720 = vcvt.s32.f32 %v719
        %721 = vst.msk [vmem:[#allocation3 + $0x8] sm:$0xff] %vm576, %v720
        %v722 = vmul.f32 %v717, 0.25
        %v723 = vsub.f32 1.0, %v720
        %v724 = vmul.f32 %v722, %v723
        %v725 = vadd.f32 %v724, %v704
        %vm726 = vcmp.gt.f32.partialorder %v725, 0.5
        %v727 = vsel %vm726, 1, 0
        %v728 = vcvt.s32.f32 %v727
        %729 = vst.msk [vmem:[#allocation3 + $0x10] sm:$0xff] %vm576, %v728
        %v730 = vmul.f32 %v725, 0.25
        %v731 = vsub.f32 1.0, %v728
        %v732 = vmul.f32 %v730, %v731
        %v733 = vadd.f32 %v732, %v705
        %vm734 = vcmp.gt.f32.partialorder %v733, 0.5
        %v735 = vsel %vm734, 1, 0
        %v736 = vcvt.s32.f32 %v735
        %737 = vst.msk [vmem:[#allocation3 + $0x18] sm:$0xff] %vm576, %v736
        %v738 = vmul.f32 %v733, 0.25
        %v739 = vsub.f32 1.0, %v736
        %v740 = vmul.f32 %v738, %v739
        %v741 = vadd.f32 %v740, %v706
        %vm742 = vcmp.gt.f32.partialorder %v741, 0.5
        %v743 = vsel %vm742, 1, 0
        %v744 = vcvt.s32.f32 %v743
        %745 = vst.msk [vmem:[#allocation3 + $0x20] sm:$0xff] %vm576, %v744
        %v746 = vmul.f32 %v741, 0.25
        %v747 = vsub.f32 1.0, %v744
        %v748 = vmul.f32 %v746, %v747
        %v749 = vadd.f32 %v748, %v707
        %vm750 = vcmp.gt.f32.partialorder %v749, 0.5
        %v751 = vsel %vm750, 1, 0
        %v752 = vcvt.s32.f32 %v751
        %753 = vst.msk [vmem:[#allocation3 + $0x28] sm:$0xff] %vm576, %v752
        %v754 = vmul.f32 %v749, 0.25
        %v755 = vsub.f32 1.0, %v752
        %v756 = vmul.f32 %v754, %v755
        %v757 = vadd.f32 %v756, %v708
        %vm758 = vcmp.gt.f32.partialorder %v757, 0.5
        %v759 = vsel %vm758, 1, 0
        %v760 = vcvt.s32.f32 %v759
        %761 = vst.msk [vmem:[#allocation3 + $0x30] sm:$0xff] %vm576, %v760
        %v762 = vmul.f32 %v757, 0.25
        %v763 = vsub.f32 1.0, %v760
        %v764 = vmul.f32 %v762, %v763
        %v765 = vadd.f32 %v764, %v709
        %vm766 = vcmp.gt.f32.partialorder %v765, 0.5
        %v767 = vsel %vm766, 1, 0
        %v768 = vcvt.s32.f32 %v767
        %769 = vst.msk [vmem:[#allocation3 + $0x38] sm:$0xff] %vm576, %v768
        %v770 = vld [vmem:[#allocation3] sm:$0xff]
        %v771 = vld [vmem:[#allocation3 + $0x8] sm:$0xff]
        %v772 = vld [vmem:[#allocation3 + $0x10] sm:$0xff]
        %v773 = vld [vmem:[#allocation3 + $0x18] sm:$0xff]
        %v774 = vld [vmem:[#allocation3 + $0x20] sm:$0xff]
        %v775 = vld [vmem:[#allocation3 + $0x28] sm:$0xff]
        %v776 = vld [vmem:[#allocation3 + $0x30] sm:$0xff]
        %v777 = vld [vmem:[#allocation3 + $0x38] sm:$0xff]
        %v778 = vld [vmem:[%s5] sm:$0xff]
        %v779 = vld [vmem:[%s5 + $0x8] sm:$0xff]
        %v780 = vld [vmem:[%s5 + $0x10] sm:$0xff]
        %v781 = vld [vmem:[%s5 + $0x18] sm:$0xff]
        %v782 = vld [vmem:[%s5 + $0x20] sm:$0xff]
        %v783 = vld [vmem:[%s5 + $0x28] sm:$0xff]
        %v784 = vld [vmem:[%s5 + $0x30] sm:$0xff]
        %v785 = vld [vmem:[%s5 + $0x38] sm:$0xff]
        %v786 = vld [vmem:[%s6] sm:$0x1]
        %v788 = vlaneseq
        %v789 = vshrl.u32 %v788, 7
        %v790 = vsub.s32 0, %v789
        %v791 = vrot.slane %v786, %v790
        %v794 = vsel %vm576, %v770, 0
        %v797 = vsel %vm576, %v771, 0
        %v800 = vsel %vm576, %v772, 0
        %v803 = vsel %vm576, %v773, 0
        %v806 = vsel %vm576, %v774, 0
        %v809 = vsel %vm576, %v775, 0
        %v812 = vsel %vm576, %v776, 0
        %v815 = vsel %vm576, %v777, 0
        %817 = vmatprep.subr.mxu0 0.0
        %818 = vmatpush1.msra.mxu0 %v778
        %819 = vmatprep.subr.mxu0 0.0
        %820 = vmatpush1.msra.mxu0 %v779
        %821 = vmatprep.subr.mxu0 0.0
        %822 = vmatpush1.msra.mxu0 %v780
        %823 = vmatprep.subr.mxu0 0.0
        %824 = vmatpush1.msra.mxu0 %v781
        %825 = vmatprep.subr.mxu0 0.0
        %826 = vmatpush1.msra.mxu0 %v782
        %827 = vmatprep.subr.mxu0 0.0
        %828 = vmatpush1.msra.mxu0 %v783
        %829 = vmatprep.subr.mxu0 0.0
        %830 = vmatpush1.msra.mxu0 %v784
        %831 = vmatprep.subr.mxu0 0.0
        %832 = vmatpush1.msra.mxu0 %v785
        %833 = vmatprep.subr.mxu0 0.0
        %834 = vmatpush1.msra.mxu0 0.0
        %835 = vmatprep.subr.mxu0 0.0
        %836 = vmatpush1.msra.mxu0 0.0
        %837 = vmatprep.subr.mxu0 0.0
        %838 = vmatpush1.msra.mxu0 0.0
        %839 = vmatprep.subr.mxu0 0.0
        %840 = vmatpush1.msra.mxu0 0.0
        %841 = vmatprep.subr.mxu0 0.0
        %842 = vmatpush1.msra.mxu0 0.0
        %843 = vmatprep.subr.mxu0 0.0
        %844 = vmatpush1.msra.mxu0 0.0
        %845 = vmatprep.subr.mxu0 0.0
        %846 = vmatpush1.msra.mxu0 0.0
        %847 = vmatprep.subr.mxu0 0.0
        %848 = vmatpush1.msra.mxu0 0.0
        %849 = vmatprep.subr.mxu0 0.0
        %850 = vmatpush1.msra.mxu0 0.0
        %851 = vmatprep.subr.mxu0 0.0
        %852 = vmatpush1.msra.mxu0 0.0
        %853 = vmatprep.subr.mxu0 0.0
        %854 = vmatpush1.msra.mxu0 0.0
        %855 = vmatprep.subr.mxu0 0.0
        %856 = vmatpush1.msra.mxu0 0.0
        %857 = vmatprep.subr.mxu0 0.0
        %858 = vmatpush1.msra.mxu0 0.0
        %859 = vmatprep.subr.mxu0 0.0
        %860 = vmatpush1.msra.mxu0 0.0
        %861 = vmatprep.subr.mxu0 0.0
        %862 = vmatpush1.msra.mxu0 0.0
        %863 = vmatprep.subr.mxu0 0.0
        %864 = vmatpush1.msra.mxu0 0.0
        %865 = vmatprep.subr.mxu0 0.0
        %866 = vmatpush1.msra.mxu0 0.0
        %867 = vmatprep.subr.mxu0 0.0
        %868 = vmatpush1.msra.mxu0 0.0
        %869 = vmatprep.subr.mxu0 0.0
        %870 = vmatpush1.msra.mxu0 0.0
        %871 = vmatprep.subr.mxu0 0.0
        %872 = vmatpush1.msra.mxu0 0.0
        %873 = vmatprep.subr.mxu0 0.0
        %874 = vmatpush1.msra.mxu0 0.0
        %875 = vmatprep.subr.mxu0 0.0
        %876 = vmatpush1.msra.mxu0 0.0
        %877 = vmatprep.subr.mxu0 0.0
        %878 = vmatpush1.msra.mxu0 0.0
        %879 = vmatprep.subr.mxu0 0.0
        %880 = vmatpush1.msra.mxu0 0.0
        %881 = vmatprep.mubr.f32.mxu0 0.0
        %882 = vmatmul.mubr.f32.gmra.mrb[0].mxu0 %v794
        %v883 = vpop.f32.mrb[0].mxu0
        %v884 = vadd.f32 %v791, %v883
        %v885 = vpop.f32.mrb[0].mxu0
        %886 = vmatprep.mubr.f32.mxu0 0.0
        %887 = vmatmul.mubr.f32.gmra.mrb[0].mxu0 %v797
        %v888 = vpop.f32.mrb[0].mxu0
        %v889 = vadd.f32 %v791, %v888
        %v890 = vpop.f32.mrb[0].mxu0
        %891 = vmatprep.mubr.f32.mxu0 0.0
        %892 = vmatmul.mubr.f32.gmra.mrb[0].mxu0 %v800
        %v893 = vpop.f32.mrb[0].mxu0
        %v894 = vadd.f32 %v791, %v893
        %v895 = vpop.f32.mrb[0].mxu0
        %896 = vmatprep.mubr.f32.mxu0 0.0
        %897 = vmatmul.mubr.f32.gmra.mrb[0].mxu0 %v803
        %v898 = vpop.f32.mrb[0].mxu0
        %v899 = vadd.f32 %v791, %v898
        %v900 = vpop.f32.mrb[0].mxu0
        %901 = vmatprep.mubr.f32.mxu0 0.0
        %902 = vmatmul.mubr.f32.gmra.mrb[0].mxu0 %v806
        %v903 = vpop.f32.mrb[0].mxu0
        %v904 = vadd.f32 %v791, %v903
        %v905 = vpop.f32.mrb[0].mxu0
        %906 = vmatprep.mubr.f32.mxu0 0.0
        %907 = vmatmul.mubr.f32.gmra.mrb[0].mxu0 %v809
        %v908 = vpop.f32.mrb[0].mxu0
        %v909 = vadd.f32 %v791, %v908
        %v910 = vpop.f32.mrb[0].mxu0
        %911 = vmatprep.mubr.f32.mxu0 0.0
        %912 = vmatmul.mubr.f32.gmra.mrb[0].mxu0 %v812
        %v913 = vpop.f32.mrb[0].mxu0
        %v914 = vadd.f32 %v791, %v913
        %v915 = vpop.f32.mrb[0].mxu0
        %916 = vmatprep.mubr.f32.mxu0 0.0
        %917 = vmatmul.mubr.f32.gmra.mrb[0].mxu0 %v815
        %v918 = vpop.f32.mrb[0].mxu0
        %v919 = vadd.f32 %v791, %v918
        %v920 = vpop.f32.mrb[0].mxu0
        %921 = vdwg.mxu0
        %v922 = vld [vmem:[%s7] sm:$0x1]
        %v923 = vld [vmem:[%s8] sm:$0x1]
        %v924 = vsel %vm354, %v884, 0.0
        %925 = vadd.xlane.f32.xlu0 %v924
        %v926 = vpop.xlane.xlu0 %925
        %v927 = vsel %vm354, %v889, 0.0
        %928 = vadd.xlane.f32.xlu0 %v927
        %v929 = vpop.xlane.xlu0 %928
        %v930 = vsel %vm354, %v894, 0.0
        %931 = vadd.xlane.f32.xlu0 %v930
        %v932 = vpop.xlane.xlu0 %931
        %v933 = vsel %vm354, %v899, 0.0
        %934 = vadd.xlane.f32.xlu0 %v933
        %v935 = vpop.xlane.xlu0 %934
        %v936 = vsel %vm354, %v904, 0.0
        %937 = vadd.xlane.f32.xlu0 %v936
        %v938 = vpop.xlane.xlu0 %937
        %v939 = vsel %vm354, %v909, 0.0
        %940 = vadd.xlane.f32.xlu0 %v939
        %v941 = vpop.xlane.xlu0 %940
        %v942 = vsel %vm354, %v914, 0.0
        %943 = vadd.xlane.f32.xlu0 %v942
        %v944 = vpop.xlane.xlu0 %943
        %v945 = vsel %vm354, %v919, 0.0
        %946 = vadd.xlane.f32.xlu0 %v945
        %v947 = vpop.xlane.xlu0 %946
        %v948 = vrcp.pop 32.0
        %v949 = vmul.f32 %v926, %v948
        %v950 = vmul.f32 %v929, %v948
        %v951 = vmul.f32 %v932, %v948
        %v952 = vmul.f32 %v935, %v948
        %v953 = vmul.f32 %v938, %v948
        %v954 = vmul.f32 %v941, %v948
        %v955 = vmul.f32 %v944, %v948
        %v956 = vmul.f32 %v947, %v948
        %v957 = vsub.f32 %v884, %v949
        %v958 = vsub.f32 %v889, %v950
        %v959 = vsub.f32 %v894, %v951
        %v960 = vsub.f32 %v899, %v952
        %v961 = vsub.f32 %v904, %v953
        %v962 = vsub.f32 %v909, %v954
        %v963 = vsub.f32 %v914, %v955
        %v964 = vsub.f32 %v919, %v956
        %v965 = vmul.f32 %v957, %v957
        %v966 = vmul.f32 %v958, %v958
        %v967 = vmul.f32 %v959, %v959
        %v968 = vmul.f32 %v960, %v960
        %v969 = vmul.f32 %v961, %v961
        %v970 = vmul.f32 %v962, %v962
        %v971 = vmul.f32 %v963, %v963
        %v972 = vmul.f32 %v964, %v964
        %v973 = vsel %vm354, %v965, 0.0
        %974 = vadd.xlane.f32.xlu0 %v973
        %v975 = vpop.xlane.xlu0 %974
        %v976 = vsel %vm354, %v966, 0.0
        %977 = vadd.xlane.f32.xlu0 %v976
        %v978 = vpop.xlane.xlu0 %977
        %v979 = vsel %vm354, %v967, 0.0
        %980 = vadd.xlane.f32.xlu0 %v979
        %v981 = vpop.xlane.xlu0 %980
        %v982 = vsel %vm354, %v968, 0.0
        %983 = vadd.xlane.f32.xlu0 %v982
        %v984 = vpop.xlane.xlu0 %983
        %v985 = vsel %vm354, %v969, 0.0
        %986 = vadd.xlane.f32.xlu0 %v985
        %v987 = vpop.xlane.xlu0 %986
        %v988 = vsel %vm354, %v970, 0.0
        %989 = vadd.xlane.f32.xlu0 %v988
        %v990 = vpop.xlane.xlu0 %989
        %v991 = vsel %vm354, %v971, 0.0
        %992 = vadd.xlane.f32.xlu0 %v991
        %v993 = vpop.xlane.xlu0 %992
        %v994 = vsel %vm354, %v972, 0.0
        %995 = vadd.xlane.f32.xlu0 %v994
        %v996 = vpop.xlane.xlu0 %995
        %v997 = vmul.f32 %v975, %v948
        %v998 = vmul.f32 %v978, %v948
        %v999 = vmul.f32 %v981, %v948
        %v1000 = vmul.f32 %v984, %v948
        %v1001 = vmul.f32 %v987, %v948
        %v1002 = vmul.f32 %v990, %v948
        %v1003 = vmul.f32 %v993, %v948
        %v1004 = vmul.f32 %v996, %v948
        %v1005 = vadd.f32 %v997, 1e-05
        %v1006 = vadd.f32 %v998, 1e-05
        %v1007 = vadd.f32 %v999, 1e-05
        %v1008 = vadd.f32 %v1000, 1e-05
        %v1009 = vadd.f32 %v1001, 1e-05
        %v1010 = vadd.f32 %v1002, 1e-05
        %v1011 = vadd.f32 %v1003, 1e-05
        %v1012 = vadd.f32 %v1004, 1e-05
        %v1013 = vrsqrt.pop %v1005
        %v1014 = vrsqrt.pop %v1006
        %v1015 = vrsqrt.pop %v1007
        %v1016 = vrsqrt.pop %v1008
        %v1017 = vrsqrt.pop %v1009
        %v1018 = vrsqrt.pop %v1010
        %v1019 = vrsqrt.pop %v1011
        %v1020 = vrsqrt.pop %v1012
        %v1021 = vmul.f32 %v957, %v1013
        %v1022 = vmul.f32 %v958, %v1014
        %v1023 = vmul.f32 %v959, %v1015
        %v1024 = vmul.f32 %v960, %v1016
        %v1025 = vmul.f32 %v961, %v1017
        %v1026 = vmul.f32 %v962, %v1018
        %v1027 = vmul.f32 %v963, %v1019
        %v1028 = vmul.f32 %v964, %v1020
        %v1030 = vlaneseq
        %v1031 = vshrl.u32 %v1030, 7
        %v1032 = vsub.s32 0, %v1031
        %v1033 = vrot.slane %v922, %v1032
        %v1035 = vmul.f32 %v1021, %v1033
        %v1036 = vmul.f32 %v1022, %v1033
        %v1037 = vmul.f32 %v1023, %v1033
        %v1038 = vmul.f32 %v1024, %v1033
        %v1039 = vmul.f32 %v1025, %v1033
        %v1040 = vmul.f32 %v1026, %v1033
        %v1041 = vmul.f32 %v1027, %v1033
        %v1042 = vmul.f32 %v1028, %v1033
        %v1044 = vlaneseq
        %v1045 = vshrl.u32 %v1044, 7
        %v1046 = vsub.s32 0, %v1045
        %v1047 = vrot.slane %v923, %v1046
        %v1049 = vadd.f32 %v1035, %v1047
        %v1050 = vadd.f32 %v1036, %v1047
        %v1051 = vadd.f32 %v1037, %v1047
        %v1052 = vadd.f32 %v1038, %v1047
        %v1053 = vadd.f32 %v1039, %v1047
        %v1054 = vadd.f32 %v1040, %v1047
        %v1055 = vadd.f32 %v1041, %v1047
        %v1056 = vadd.f32 %v1042, %v1047
        %1057 = vst.msk [vmem:[%s349] sm:$0xff] %vm354, %v1049
        %s1058 = scalar_lea.vmem %s349, 8 [#allocation7]
        %1059 = vst.msk [vmem:[%s1058] sm:$0xff] %vm354, %v1050
        %s1060 = scalar_lea.vmem %s349, 16 [#allocation7]
        %1061 = vst.msk [vmem:[%s1060] sm:$0xff] %vm354, %v1051
        %s1062 = scalar_lea.vmem %s349, 24 [#allocation7]
        %1063 = vst.msk [vmem:[%s1062] sm:$0xff] %vm354, %v1052
        %s1064 = scalar_lea.vmem %s349, 32 [#allocation7]
        %1065 = vst.msk [vmem:[%s1064] sm:$0xff] %vm354, %v1053
        %s1066 = scalar_lea.vmem %s349, 40 [#allocation7]
        %1067 = vst.msk [vmem:[%s1066] sm:$0xff] %vm354, %v1054
        %s1068 = scalar_lea.vmem %s349, 48 [#allocation7]
        %1069 = vst.msk [vmem:[%s1068] sm:$0xff] %vm354, %v1055
        %s1070 = scalar_lea.vmem %s349, 56 [#allocation7]
        %1071 = vst.msk [vmem:[%s1070] sm:$0xff] %vm354, %v1056
        %s1072 = sand.u32 %s228, 1
        %s1073 = scalar_lea.sflag [#allocation6], %s1072
        %s1074 = sand.u32 %s228, 1
        %s1075 = smul.addr %s1074, 64
        %s1076 = scalar_lea.vmem [#allocation7], %s1075
        // Predicated region
        $region61: #{tpu_custom_call.1} parent=55 // pred_check
          %p1077 = pneg %p238
        $region62: #{tpu_custom_call.1} parent=55 // pred_check_branch
          %1079 = sbr.rel (%p1077) target = $region64
        $region63: #{tpu_custom_call.1} parent=55 // pred_region
          %s1081 = ssub.s32 1024, 1024
          %1082 = vsyncadd %s1073, %s1081
          %s1083 = smul.addr %s26, 128
          %s1084 = scalar_lea.hbm %s9, %s1083
          %s1085 = sshll.u32 %s1076, 4
          %s1086 = int_to_ptr.vmem [resolvable:$true] %s1085
          %1091 = dma.vmem_to_hbm [thread:$0]  %s1086, 1024, %s1084, %s1073, 128, 256, 8
        $region64: #{tpu_custom_call.1} parent=55 // pred_fallthru
          _
      $region56: #{tpu_custom_call.1} parent=5 // pred_fallthru
        _
      %p1092 = scmp.le.s32.totalorder 2, %s21
      // Predicated region
      $region65: #{tpu_custom_call.1} parent=5 // pred_check
        %p1093 = pneg %p1092
      $region66: #{tpu_custom_call.1} parent=5 // pred_check_branch
        %1095 = sbr.rel (%p1093) target = $region68
      $region67: #{tpu_custom_call.1} parent=5 // pred_region
        %s1096 = ssub.s32 %s21, 2
        // Predicated region
        $region69: #{tpu_custom_call.1} parent=67 // pred_check
          %p1097 = pneg %p244
        $region70: #{tpu_custom_call.1} parent=67 // pred_check_branch
          %1099 = sbr.rel (%p1097) target = $region72
        $region71: #{tpu_custom_call.1} parent=67 // pred_region
          %s1100 = sand.u32 %s229, 1
          %s1101 = scalar_lea.sflag [#allocation6], %s1100
          %s1102 = sand.u32 %s229, 1
          %s1103 = smul.addr %s1102, 64
          %s1104 = scalar_lea.vmem [#allocation7], %s1103
          %1105 = dma.done %s1101, 1024
        $region72: #{tpu_custom_call.1} parent=67 // pred_fallthru
          _
      $region68: #{tpu_custom_call.1} parent=5 // pred_fallthru
        _
    $region6: #{tpu_custom_call.1} parent=1 // loop_footer
      %s25 = sadd.s32 1, %s21
    $region7: #{tpu_custom_call.1} parent=1 // loop_footer_branch
      %20 = sbr.rel target = $region3
    $region8: #{tpu_custom_call.1} parent=1 // loop_exit
      _
    %1106 = vsyncpa [#allocation5], 1
    %s1107 = scalar_lea.sflag [#allocation5], 1
    %1108 = vsyncpa %s1107, 1
    %1109 = vsyncpa [#allocation6], 1
    %s1110 = scalar_lea.sflag [#allocation6], 1
    %1111 = vsyncpa %s1110, 1

</llo_original>
